<compile_context>
chip_gen: v5e
topology: v5e:2x2
jax: 0.10.0
libtpu: 0.0.40
codegen_flags: <defaults>
</compile_context>

<pallas_src>
import functools

import jax
import jax.numpy as jnp
from jax.experimental import pallas as pl
from jax.experimental.pallas import tpu as pltpu


def _round_up(x, m):
    return (x + m - 1) // m * m


# ----------------------------------------------------------------------------
# Pallas kernels
# ----------------------------------------------------------------------------
def _conv_matmul_kernel(w_ref, p_ref, b_ref, o_ref, *, act):
    """o = act(w @ p + b).  w: (Cout, CK) bf16, p: (CK, TM) bf16, b: (Cout, 1) f32."""
    acc = jnp.dot(w_ref[...], p_ref[...], preferred_element_type=jnp.float32)
    acc = acc + b_ref[...]                      # per-row (sublane) bias, lane-broadcast
    if act == "relu":
        acc = jnp.maximum(acc, 0.0)
    o_ref[...] = acc.astype(o_ref.dtype)


def pallas_conv_matmul(wf, p, b, act, tm):
    """wf: (Cout, CK), p: (CK, M), M % tm == 0 and tm % 128 == 0 -> (Cout, M) f32."""
    Cout, CK = wf.shape
    M = p.shape[1]
    kernel = functools.partial(_conv_matmul_kernel, act=act)
    cost = pl.CostEstimate(
        flops=2 * Cout * CK * M,
        transcendentals=0,
        bytes_accessed=(Cout * CK + CK * M) * 2 + (Cout * M + Cout) * 4,
    )
    return pl.pallas_call(
        kernel,
        out_shape=jax.ShapeDtypeStruct((Cout, M), jnp.float32),
        grid=(M // tm,),
        in_specs=[
            pl.BlockSpec((Cout, CK), lambda i: (0, 0)),   # weights, resident
            pl.BlockSpec((CK, tm), lambda i: (0, i)),     # im2col slab, M-tiled (lane dim)
            pl.BlockSpec((Cout, 1), lambda i: (0, 0)),    # bias
        ],
        out_specs=pl.BlockSpec((Cout, tm), lambda i: (0, i)),
        compiler_params=pltpu.CompilerParams(dimension_semantics=("parallel",)),
        cost_estimate=cost,
    )(wf.astype(jnp.bfloat16), p.astype(jnp.bfloat16),
      b.reshape(Cout, 1).astype(jnp.float32))


def _fc_loc_kernel(x_ref, w1_ref, b1_ref, w2_ref, b2_ref, o_ref):
    """theta = (relu(x @ w1 + b1)) @ w2 + b2, fused in one kernel."""
    h = jnp.dot(x_ref[...], w1_ref[...], preferred_element_type=jnp.float32) + b1_ref[...]
    h = jnp.maximum(h, 0.0)
    o = jnp.dot(h, w2_ref[...], preferred_element_type=jnp.float32) + b2_ref[...]
    o_ref[...] = o.astype(o_ref.dtype)


def _head_kernel(x_ref, w1_ref, b1_ref, w2_ref, b2_ref, o_ref):
    """out = log_softmax(relu(x @ w1 + b1) @ w2 + b2), fused in one kernel (f32)."""
    h = jnp.dot(x_ref[...], w1_ref[...], preferred_element_type=jnp.float32) + b1_ref[...]
    h = jnp.maximum(h, 0.0)
    logits = jnp.dot(h, w2_ref[...], preferred_element_type=jnp.float32) + b2_ref[...]
    m = jnp.max(logits, axis=-1, keepdims=True)
    z = logits - m
    lse = jnp.log(jnp.sum(jnp.exp(z), axis=-1, keepdims=True))
    o_ref[...] = (z - lse).astype(o_ref.dtype)


def pallas_fused_mlp(x, w1, b1, w2, b2, kernel_fn):
    """x: (B, K1), w1: (K1, N1), w2: (N1, N2) -> (B, N2). Tiny: whole-array blocks."""
    B, K1 = x.shape
    N1 = w1.shape[1]
    N2 = w2.shape[1]
    return pl.pallas_call(
        kernel_fn,
        out_shape=jax.ShapeDtypeStruct((B, N2), jnp.float32),
        grid=(1,),
        in_specs=[
            pl.BlockSpec((B, K1), lambda i: (0, 0)),
            pl.BlockSpec((K1, N1), lambda i: (0, 0)),
            pl.BlockSpec((1, N1), lambda i: (0, 0)),
            pl.BlockSpec((N1, N2), lambda i: (0, 0)),
            pl.BlockSpec((1, N2), lambda i: (0, 0)),
        ],
        out_specs=pl.BlockSpec((B, N2), lambda i: (0, 0)),
    )(x.astype(jnp.float32), w1.astype(jnp.float32),
      b1.reshape(1, N1).astype(jnp.float32),
      w2.astype(jnp.float32), b2.reshape(1, N2).astype(jnp.float32))


# ----------------------------------------------------------------------------
# Conv / pooling glue (channels-major "CBHW" activation layout)
# ----------------------------------------------------------------------------
def conv2d_cbhw(x, w, b, act="relu"):
    """PyTorch-style Conv2d (stride 1, valid). x: (Cin, B, H, W) -> (Cout, B, Ho, Wo)."""
    Cin, B, H, W = x.shape
    Cout, _, K, _ = w.shape
    Ho, Wo = H - K + 1, W - K + 1
    M = B * Ho * Wo
    xb = x.astype(jnp.bfloat16)                 # halve HBM bytes of the im2col slab
    # im2col with the spatial dim last (lane dim); row order (cin, kh, kw)
    # matches w.reshape(Cout, Cin*K*K); column order (b, ho, wo) reshapes
    # straight back to CBHW with no transpose.
    # TODO(synk): the K*K-expanded slab is still materialized in HBM by XLA
    # glue; folding im2col into the kernel needs a lane-crossing (Ho, Wo)
    # flatten that Mosaic does not express cleanly at these non-128 widths.
    cols = [xb[:, :, kh:kh + Ho, kw:kw + Wo] for kh in range(K) for kw in range(K)]
    p = jnp.stack(cols, axis=1).reshape(Cin * K * K, M)
    # Pad M to a lane-aligned multiple and pick the largest of 512/384/256/128
    # that divides it, so the grid pipelines with minimal wasted columns.
    m128 = _round_up(M, 128)
    tm = next(t for t in (512, 384, 256, 128) if m128 % t == 0)
    if m128 != M:
        p = jnp.pad(p, ((0, 0), (0, m128 - M)))
    out = pallas_conv_matmul(w.reshape(Cout, Cin * K * K), p, b, act, tm)
    return out[:, :M].reshape(Cout, B, Ho, Wo)


def max_pool2_cbhw(x):
    """MaxPool2d(kernel=2, stride=2), floor semantics. x: (C, B, H, W)."""
    # TODO(synk): pool stays in XLA glue; fusing it into the conv epilogue needs a
    # lane-dim de-interleave of the flattened (Ho, Wo) columns.
    C, B, H, W = x.shape
    Ho, Wo = H // 2, W // 2
    x = x[:, :, :Ho * 2, :Wo * 2].reshape(C, B, Ho, 2, Wo, 2)
    return jnp.max(x, axis=(3, 5))


# ----------------------------------------------------------------------------
# affine_grid / grid_sample (align_corners=False, bilinear, zeros padding)
# TODO(synk): the bilinear gather of grid_sample stays in plain JAX (data-
# dependent gather has no clean rectangular BlockSpec at these tiny sizes).
# ----------------------------------------------------------------------------
def affine_grid(theta, H, W):
    xs = (2.0 * (jnp.arange(W, dtype=jnp.float32) + 0.5) / W) - 1.0
    ys = (2.0 * (jnp.arange(H, dtype=jnp.float32) + 0.5) / H) - 1.0
    gx, gy = jnp.meshgrid(xs, ys)                      # (H, W)
    base = jnp.stack([gx, gy, jnp.ones_like(gx)], -1)  # (H, W, 3)
    return jnp.einsum("hwk,bjk->bhwj", base, theta)    # (B, H, W, 2) -> (x, y)


def grid_sample_bilinear(x, grid):
    B, C, H, W = x.shape
    Hg, Wg = grid.shape[1], grid.shape[2]
    gx, gy = grid[..., 0], grid[..., 1]
    ix = ((gx + 1.0) * W - 1.0) * 0.5
    iy = ((gy + 1.0) * H - 1.0) * 0.5
    x0 = jnp.floor(ix)
    y0 = jnp.floor(iy)
    x1, y1 = x0 + 1.0, y0 + 1.0
    x_flat = x.reshape(B, C, H * W)

    def sample(xi, yi):
        valid = ((xi >= 0) & (xi <= W - 1) & (yi >= 0) & (yi <= H - 1)).astype(x.dtype)
        xc = jnp.clip(xi.astype(jnp.int32), 0, W - 1)
        yc = jnp.clip(yi.astype(jnp.int32), 0, H - 1)
        idx = jnp.broadcast_to((yc * W + xc).reshape(B, 1, Hg * Wg), (B, C, Hg * Wg))
        vals = jnp.take_along_axis(x_flat, idx, axis=2).reshape(B, C, Hg, Wg)
        return vals * valid.reshape(B, 1, Hg, Wg)

    v00, v01 = sample(x0, y0), sample(x1, y0)
    v10, v11 = sample(x0, y1), sample(x1, y1)
    wx1 = (ix - x0)[:, None, :, :]
    wx0 = 1.0 - wx1
    wy1 = (iy - y0)[:, None, :, :]
    wy0 = 1.0 - wy1
    return v00 * wx0 * wy0 + v01 * wx1 * wy0 + v10 * wx0 * wy1 + v11 * wx1 * wy1


# ----------------------------------------------------------------------------
# Parameters (deterministic, PyTorch-default-style uniform init)
# ----------------------------------------------------------------------------
def init_params(key):
    def u(k, shape, fan_in):
        bound = 1.0 / (fan_in ** 0.5)
        return jax.random.uniform(k, shape, jnp.float32, -bound, bound)

    ks = jax.random.split(key, 14)
    p = {}
    p["conv1_w"] = u(ks[0], (10, 1, 5, 5), 25)
    p["conv1_b"] = u(ks[1], (10,), 25)
    p["conv2_w"] = u(ks[2], (20, 10, 5, 5), 250)
    p["conv2_b"] = u(ks[3], (20,), 250)
    p["fc1_w"] = u(ks[4], (50, 320), 320)
    p["fc1_b"] = u(ks[5], (50,), 320)
    p["fc2_w"] = u(ks[6], (10, 50), 50)
    p["fc2_b"] = u(ks[7], (10,), 50)
    p["loc_conv1_w"] = u(ks[8], (8, 1, 7, 7), 49)
    p["loc_conv1_b"] = u(ks[9], (8,), 49)
    p["loc_conv2_w"] = u(ks[10], (10, 8, 5, 5), 200)
    p["loc_conv2_b"] = u(ks[11], (10,), 200)
    p["fc_loc1_w"] = u(ks[12], (32, 90), 90)
    p["fc_loc1_b"] = u(ks[13], (32,), 90)
    # zero-init weight + identity-transform bias (as in the module)
    p["fc_loc2_w"] = jnp.zeros((6, 32), jnp.float32)
    p["fc_loc2_b"] = jnp.array([1, 0, 0, 0, 1, 0], jnp.float32)
    return p


# ----------------------------------------------------------------------------
# Forward pass
# ----------------------------------------------------------------------------
def net_forward(params, x):
    B = x.shape[0]

    # ---- STN: localization network ----
    # conv(1->8,7) -> maxpool2 -> relu (relu fused into matmul; relu/pool commute)
    xc = jnp.transpose(x, (1, 0, 2, 3))                                   # (1, B, 28, 28) CBHW
    xs = max_pool2_cbhw(conv2d_cbhw(xc, params["loc_conv1_w"], params["loc_conv1_b"], act="relu"))
    # conv(8->10,5) -> maxpool2 -> relu
    xs = max_pool2_cbhw(conv2d_cbhw(xs, params["loc_conv2_w"], params["loc_conv2_b"], act="relu"))
    xs = jnp.transpose(xs, (1, 0, 2, 3)).reshape(B, 10 * 3 * 3)           # PyTorch (c, h, w) order

    # fused fc_loc: linear(90->32) -> relu -> linear(32->6)
    theta = pallas_fused_mlp(xs, params["fc_loc1_w"].T, params["fc_loc1_b"],
                             params["fc_loc2_w"].T, params["fc_loc2_b"],
                             _fc_loc_kernel).reshape(B, 2, 3)

    grid = affine_grid(theta, x.shape[2], x.shape[3])
    xt = grid_sample_bilinear(x, grid)                                    # (B, 1, 28, 28) NCHW

    # ---- main classifier ----
    xc = jnp.transpose(xt, (1, 0, 2, 3))                                  # (1, B, 28, 28) CBHW
    h = max_pool2_cbhw(conv2d_cbhw(xc, params["conv1_w"], params["conv1_b"], act="relu"))
    # conv2_drop is Dropout2d -> identity in eval mode
    h = max_pool2_cbhw(conv2d_cbhw(h, params["conv2_w"], params["conv2_b"], act="relu"))
    h = jnp.transpose(h, (1, 0, 2, 3)).reshape(B, 320)

    # F.dropout(training=False) -> identity; fc1 -> relu -> fc2 -> log_softmax fused.
    return pallas_fused_mlp(h, params["fc1_w"].T, params["fc1_b"],
                            params["fc2_w"].T, params["fc2_b"],
                            _head_kernel)


if __name__ == "__main__":
    key = jax.random.PRNGKey(0)
    pkey, xkey = jax.random.split(key)
    params = init_params(pkey)
    x = jax.random.normal(xkey, (2, 1, 28, 28), jnp.float32)  # MNIST-sized input

    out = jax.block_until_ready(jax.jit(net_forward)(params, x))

    assert out.shape == (2, 10), out.shape
    # rows of log_softmax must exponentiate-and-sum to ~1
    assert jnp.allclose(jnp.sum(jnp.exp(out), axis=1), 1.0, atol=1e-4)
    print("KERNEL_OK")
</pallas_src>

<mosaic_0001>
module attributes {stable_mosaic.version = 11 : i64} {
  func.func @_conv_matmul_kernel(%arg0: i32, %arg1: memref<8x49xbf16, #tpu.memory_space<vmem>>, %arg2: memref<49x512xbf16, #tpu.memory_space<vmem>>, %arg3: memref<8x1xf32, #tpu.memory_space<vmem>>, %arg4: memref<8x512xf32, #tpu.memory_space<vmem>>) attributes {dimension_semantics = [#tpu.dimension_semantics<parallel>], iteration_bounds = array<i64: 2>, scalar_prefetch = 0 : i64, scratch_operands = 0 : i64, tpu.core_type = #tpu.core_type<tc>, window_params = [{pipeline_mode = #tpu.pipeline_mode<synchronous>, transform_indices = @transform_0, window_bounds = array<i64: 8, 49>}, {transform_indices = @transform_1, window_bounds = array<i64: 49, 512>}, {pipeline_mode = #tpu.pipeline_mode<synchronous>, transform_indices = @transform_2, window_bounds = array<i64: 8, 1>}, {transform_indices = @transform_3, window_bounds = array<i64: 8, 512>}]} {
    %c0 = arith.constant 0 : index
    %c0_0 = arith.constant 0 : index
    %0 = vector.load %arg1[%c0, %c0_0] : memref<8x49xbf16, #tpu.memory_space<vmem>>, vector<8x49xbf16>
    %c0_1 = arith.constant 0 : index
    %c0_2 = arith.constant 0 : index
    %1 = vector.load %arg2[%c0_1, %c0_2] : memref<49x512xbf16, #tpu.memory_space<vmem>>, vector<49x512xbf16>
    %cst = arith.constant dense<0.000000e+00> : vector<8x512xf32>
    %2 = tpu.matmul %0, %1, %cst {dimension_numbers = #tpu.dot_dimension_numbers<[1], [0], [0], [1], [0, 0, 1, 1], [], []>} : vector<8x49xbf16>, vector<49x512xbf16>, vector<8x512xf32> -> vector<8x512xf32>
    %c0_3 = arith.constant 0 : index
    %c0_4 = arith.constant 0 : index
    %3 = vector.load %arg3[%c0_3, %c0_4] : memref<8x1xf32, #tpu.memory_space<vmem>>, vector<8x1xf32>
    %4 = vector.broadcast %3 : vector<8x1xf32> to vector<8x512xf32>
    %5 = arith.addf %2, %4 : vector<8x512xf32>
    %cst_5 = arith.constant 0.000000e+00 : f32
    %6 = vector.broadcast %cst_5 : f32 to vector<8x512xf32>
    %7 = arith.maximumf %5, %6 : vector<8x512xf32>
    %c0_6 = arith.constant 0 : index
    %c0_7 = arith.constant 0 : index
    %8 = vector.load %arg4[%c0_6, %c0_7] : memref<8x512xf32, #tpu.memory_space<vmem>>, vector<8x512xf32>
    tpu.vector_store %arg4[%c0_6, %c0_7], %7 {strides = array<i32>} : memref<8x512xf32, #tpu.memory_space<vmem>>, vector<8x512xf32>,
    return
  }
  func.func @transform_0(%arg0: i32) -> (i32, i32) {
    %c0_i32 = arith.constant 0 : i32
    %c0_i32_0 = arith.constant 0 : i32
    %c0_i32_1 = arith.constant 0 : i32
    return %c0_i32, %c0_i32_0 : i32, i32
  }
  func.func @transform_1(%arg0: i32) -> (i32, i32) {
    %c0_i32 = arith.constant 0 : i32
    %c0_i32_0 = arith.constant 0 : i32
    return %c0_i32, %arg0 : i32, i32
  }
  func.func @transform_2(%arg0: i32) -> (i32, i32) {
    %c0_i32 = arith.constant 0 : i32
    %c0_i32_0 = arith.constant 0 : i32
    %c0_i32_1 = arith.constant 0 : i32
    return %c0_i32, %c0_i32_0 : i32, i32
  }
  func.func @transform_3(%arg0: i32) -> (i32, i32) {
    %c0_i32 = arith.constant 0 : i32
    %c0_i32_0 = arith.constant 0 : i32
    return %c0_i32, %arg0 : i32, i32
  }
}

module attributes {stable_mosaic.version = 11 : i64} {
  func.func @_conv_matmul_kernel(%arg0: i32, %arg1: memref<10x200xbf16, #tpu.memory_space<vmem>>, %arg2: memref<200x128xbf16, #tpu.memory_space<vmem>>, %arg3: memref<10x1xf32, #tpu.memory_space<vmem>>, %arg4: memref<10x128xf32, #tpu.memory_space<vmem>>) attributes {dimension_semantics = [#tpu.dimension_semantics<parallel>], iteration_bounds = array<i64: 1>, scalar_prefetch = 0 : i64, scratch_operands = 0 : i64, tpu.core_type = #tpu.core_type<tc>, window_params = [{pipeline_mode = #tpu.pipeline_mode<synchronous>, transform_indices = @transform_0, window_bounds = array<i64: 10, 200>}, {transform_indices = @transform_1, window_bounds = array<i64: 200, 128>}, {pipeline_mode = #tpu.pipeline_mode<synchronous>, transform_indices = @transform_2, window_bounds = array<i64: 10, 1>}, {transform_indices = @transform_3, window_bounds = array<i64: 10, 128>}]} {
    %c0 = arith.constant 0 : index
    %c0_0 = arith.constant 0 : index
    %0 = vector.load %arg1[%c0, %c0_0] : memref<10x200xbf16, #tpu.memory_space<vmem>>, vector<10x200xbf16>
    %c0_1 = arith.constant 0 : index
    %c0_2 = arith.constant 0 : index
    %1 = vector.load %arg2[%c0_1, %c0_2] : memref<200x128xbf16, #tpu.memory_space<vmem>>, vector<200x128xbf16>
    %cst = arith.constant dense<0.000000e+00> : vector<10x128xf32>
    %2 = tpu.matmul %0, %1, %cst {dimension_numbers = #tpu.dot_dimension_numbers<[1], [0], [0], [1], [0, 0, 1, 1], [], []>} : vector<10x200xbf16>, vector<200x128xbf16>, vector<10x128xf32> -> vector<10x128xf32>
    %c0_3 = arith.constant 0 : index
    %c0_4 = arith.constant 0 : index
    %3 = vector.load %arg3[%c0_3, %c0_4] : memref<10x1xf32, #tpu.memory_space<vmem>>, vector<10x1xf32>
    %4 = vector.broadcast %3 : vector<10x1xf32> to vector<10x128xf32>
    %5 = arith.addf %2, %4 : vector<10x128xf32>
    %cst_5 = arith.constant 0.000000e+00 : f32
    %6 = vector.broadcast %cst_5 : f32 to vector<10x128xf32>
    %7 = arith.maximumf %5, %6 : vector<10x128xf32>
    %c0_6 = arith.constant 0 : index
    %c0_7 = arith.constant 0 : index
    %8 = vector.load %arg4[%c0_6, %c0_7] : memref<10x128xf32, #tpu.memory_space<vmem>>, vector<10x128xf32>
    tpu.vector_store %arg4[%c0_6, %c0_7], %7 {strides = array<i32>} : memref<10x128xf32, #tpu.memory_space<vmem>>, vector<10x128xf32>,
    return
  }
  func.func @transform_0(%arg0: i32) -> (i32, i32) {
    %c0_i32 = arith.constant 0 : i32
    %c0_i32_0 = arith.constant 0 : i32
    %c0_i32_1 = arith.constant 0 : i32
    return %c0_i32, %c0_i32_0 : i32, i32
  }
  func.func @transform_1(%arg0: i32) -> (i32, i32) {
    %c0_i32 = arith.constant 0 : i32
    %c0_i32_0 = arith.constant 0 : i32
    return %c0_i32, %arg0 : i32, i32
  }
  func.func @transform_2(%arg0: i32) -> (i32, i32) {
    %c0_i32 = arith.constant 0 : i32
    %c0_i32_0 = arith.constant 0 : i32
    %c0_i32_1 = arith.constant 0 : i32
    return %c0_i32, %c0_i32_0 : i32, i32
  }
  func.func @transform_3(%arg0: i32) -> (i32, i32) {
    %c0_i32 = arith.constant 0 : i32
    %c0_i32_0 = arith.constant 0 : i32
    return %c0_i32, %arg0 : i32, i32
  }
}

module attributes {stable_mosaic.version = 11 : i64} {
  func.func @_fc_loc_kernel(%arg0: i32, %arg1: memref<2x90xf32, #tpu.memory_space<vmem>>, %arg2: memref<90x32xf32, #tpu.memory_space<vmem>>, %arg3: memref<1x32xf32, #tpu.memory_space<vmem>>, %arg4: memref<32x6xf32, #tpu.memory_space<vmem>>, %arg5: memref<1x6xf32, #tpu.memory_space<vmem>>, %arg6: memref<2x6xf32, #tpu.memory_space<vmem>>) attributes {dimension_semantics = [#tpu.dimension_semantics<arbitrary>], iteration_bounds = array<i64: 1>, scalar_prefetch = 0 : i64, scratch_operands = 0 : i64, tpu.core_type = #tpu.core_type<tc>, window_params = [{pipeline_mode = #tpu.pipeline_mode<synchronous>, transform_indices = @transform_0, window_bounds = array<i64: 2, 90>}, {pipeline_mode = #tpu.pipeline_mode<synchronous>, transform_indices = @transform_1, window_bounds = array<i64: 90, 32>}, {pipeline_mode = #tpu.pipeline_mode<synchronous>, transform_indices = @transform_2, window_bounds = array<i64: 1, 32>}, {pipeline_mode = #tpu.pipeline_mode<synchronous>, transform_indices = @transform_3, window_bounds = array<i64: 32, 6>}, {pipeline_mode = #tpu.pipeline_mode<synchronous>, transform_indices = @transform_4, window_bounds = array<i64: 1, 6>}, {pipeline_mode = #tpu.pipeline_mode<synchronous>, transform_indices = @transform_5, window_bounds = array<i64: 2, 6>}]} {
    %c0 = arith.constant 0 : index
    %c0_0 = arith.constant 0 : index
    %0 = vector.load %arg1[%c0, %c0_0] : memref<2x90xf32, #tpu.memory_space<vmem>>, vector<2x90xf32>
    %c0_1 = arith.constant 0 : index
    %c0_2 = arith.constant 0 : index
    %1 = vector.load %arg2[%c0_1, %c0_2] : memref<90x32xf32, #tpu.memory_space<vmem>>, vector<90x32xf32>
    %cst = arith.constant dense<0.000000e+00> : vector<2x32xf32>
    %2 = tpu.matmul %0, %1, %cst {dimension_numbers = #tpu.dot_dimension_numbers<[1], [0], [0], [1], [0, 0, 1, 1], [], []>} : vector<2x90xf32>, vector<90x32xf32>, vector<2x32xf32> -> vector<2x32xf32>
    %c0_3 = arith.constant 0 : index
    %c0_4 = arith.constant 0 : index
    %3 = vector.load %arg3[%c0_3, %c0_4] : memref<1x32xf32, #tpu.memory_space<vmem>>, vector<1x32xf32>
    %4 = vector.broadcast %3 : vector<1x32xf32> to vector<2x32xf32>
    %5 = arith.addf %2, %4 : vector<2x32xf32>
    %cst_5 = arith.constant 0.000000e+00 : f32
    %6 = vector.broadcast %cst_5 : f32 to vector<2x32xf32>
    %7 = arith.maximumf %5, %6 : vector<2x32xf32>
    %c0_6 = arith.constant 0 : index
    %c0_7 = arith.constant 0 : index
    %8 = vector.load %arg4[%c0_6, %c0_7] : memref<32x6xf32, #tpu.memory_space<vmem>>, vector<32x6xf32>
    %cst_8 = arith.constant dense<0.000000e+00> : vector<2x6xf32>
    %9 = tpu.matmul %7, %8, %cst_8 {dimension_numbers = #tpu.dot_dimension_numbers<[1], [0], [0], [1], [0, 0, 1, 1], [], []>} : vector<2x32xf32>, vector<32x6xf32>, vector<2x6xf32> -> vector<2x6xf32>
    %c0_9 = arith.constant 0 : index
    %c0_10 = arith.constant 0 : index
    %10 = vector.load %arg5[%c0_9, %c0_10] : memref<1x6xf32, #tpu.memory_space<vmem>>, vector<1x6xf32>
    %11 = vector.broadcast %10 : vector<1x6xf32> to vector<2x6xf32>
    %12 = arith.addf %9, %11 : vector<2x6xf32>
    %c0_11 = arith.constant 0 : index
    %c0_12 = arith.constant 0 : index
    %13 = vector.load %arg6[%c0_11, %c0_12] : memref<2x6xf32, #tpu.memory_space<vmem>>, vector<2x6xf32>
    tpu.vector_store %arg6[%c0_11, %c0_12], %12 {strides = array<i32>} : memref<2x6xf32, #tpu.memory_space<vmem>>, vector<2x6xf32>,
    return
  }
  func.func @transform_0(%arg0: i32) -> (i32, i32) {
    %c0_i32 = arith.constant 0 : i32
    %c0_i32_0 = arith.constant 0 : i32
    %c0_i32_1 = arith.constant 0 : i32
    return %c0_i32, %c0_i32_0 : i32, i32
  }
  func.func @transform_1(%arg0: i32) -> (i32, i32) {
    %c0_i32 = arith.constant 0 : i32
    %c0_i32_0 = arith.constant 0 : i32
    %c0_i32_1 = arith.constant 0 : i32
    return %c0_i32, %c0_i32_0 : i32, i32
  }
  func.func @transform_2(%arg0: i32) -> (i32, i32) {
    %c0_i32 = arith.constant 0 : i32
    %c0_i32_0 = arith.constant 0 : i32
    %c0_i32_1 = arith.constant 0 : i32
    return %c0_i32, %c0_i32_0 : i32, i32
  }
  func.func @transform_3(%arg0: i32) -> (i32, i32) {
    %c0_i32 = arith.constant 0 : i32
    %c0_i32_0 = arith.constant 0 : i32
    %c0_i32_1 = arith.constant 0 : i32
    return %c0_i32, %c0_i32_0 : i32, i32
  }
  func.func @transform_4(%arg0: i32) -> (i32, i32) {
    %c0_i32 = arith.constant 0 : i32
    %c0_i32_0 = arith.constant 0 : i32
    %c0_i32_1 = arith.constant 0 : i32
    return %c0_i32, %c0_i32_0 : i32, i32
  }
  func.func @transform_5(%arg0: i32) -> (i32, i32) {
    %c0_i32 = arith.constant 0 : i32
    %c0_i32_0 = arith.constant 0 : i32
    %c0_i32_1 = arith.constant 0 : i32
    return %c0_i32, %c0_i32_0 : i32, i32
  }
}

module attributes {stable_mosaic.version = 11 : i64} {
  func.func @_conv_matmul_kernel(%arg0: i32, %arg1: memref<10x25xbf16, #tpu.memory_space<vmem>>, %arg2: memref<25x384xbf16, #tpu.memory_space<vmem>>, %arg3: memref<10x1xf32, #tpu.memory_space<vmem>>, %arg4: memref<10x384xf32, #tpu.memory_space<vmem>>) attributes {dimension_semantics = [#tpu.dimension_semantics<parallel>], iteration_bounds = array<i64: 3>, scalar_prefetch = 0 : i64, scratch_operands = 0 : i64, tpu.core_type = #tpu.core_type<tc>, window_params = [{pipeline_mode = #tpu.pipeline_mode<synchronous>, transform_indices = @transform_0, window_bounds = array<i64: 10, 25>}, {transform_indices = @transform_1, window_bounds = array<i64: 25, 384>}, {pipeline_mode = #tpu.pipeline_mode<synchronous>, transform_indices = @transform_2, window_bounds = array<i64: 10, 1>}, {transform_indices = @transform_3, window_bounds = array<i64: 10, 384>}]} {
    %c0 = arith.constant 0 : index
    %c0_0 = arith.constant 0 : index
    %0 = vector.load %arg1[%c0, %c0_0] : memref<10x25xbf16, #tpu.memory_space<vmem>>, vector<10x25xbf16>
    %c0_1 = arith.constant 0 : index
    %c0_2 = arith.constant 0 : index
    %1 = vector.load %arg2[%c0_1, %c0_2] : memref<25x384xbf16, #tpu.memory_space<vmem>>, vector<25x384xbf16>
    %cst = arith.constant dense<0.000000e+00> : vector<10x384xf32>
    %2 = tpu.matmul %0, %1, %cst {dimension_numbers = #tpu.dot_dimension_numbers<[1], [0], [0], [1], [0, 0, 1, 1], [], []>} : vector<10x25xbf16>, vector<25x384xbf16>, vector<10x384xf32> -> vector<10x384xf32>
    %c0_3 = arith.constant 0 : index
    %c0_4 = arith.constant 0 : index
    %3 = vector.load %arg3[%c0_3, %c0_4] : memref<10x1xf32, #tpu.memory_space<vmem>>, vector<10x1xf32>
    %4 = vector.broadcast %3 : vector<10x1xf32> to vector<10x384xf32>
    %5 = arith.addf %2, %4 : vector<10x384xf32>
    %cst_5 = arith.constant 0.000000e+00 : f32
    %6 = vector.broadcast %cst_5 : f32 to vector<10x384xf32>
    %7 = arith.maximumf %5, %6 : vector<10x384xf32>
    %c0_6 = arith.constant 0 : index
    %c0_7 = arith.constant 0 : index
    %8 = vector.load %arg4[%c0_6, %c0_7] : memref<10x384xf32, #tpu.memory_space<vmem>>, vector<10x384xf32>
    tpu.vector_store %arg4[%c0_6, %c0_7], %7 {strides = array<i32>} : memref<10x384xf32, #tpu.memory_space<vmem>>, vector<10x384xf32>,
    return
  }
  func.func @transform_0(%arg0: i32) -> (i32, i32) {
    %c0_i32 = arith.constant 0 : i32
    %c0_i32_0 = arith.constant 0 : i32
    %c0_i32_1 = arith.constant 0 : i32
    return %c0_i32, %c0_i32_0 : i32, i32
  }
  func.func @transform_1(%arg0: i32) -> (i32, i32) {
    %c0_i32 = arith.constant 0 : i32
    %c0_i32_0 = arith.constant 0 : i32
    return %c0_i32, %arg0 : i32, i32
  }
  func.func @transform_2(%arg0: i32) -> (i32, i32) {
    %c0_i32 = arith.constant 0 : i32
    %c0_i32_0 = arith.constant 0 : i32
    %c0_i32_1 = arith.constant 0 : i32
    return %c0_i32, %c0_i32_0 : i32, i32
  }
  func.func @transform_3(%arg0: i32) -> (i32, i32) {
    %c0_i32 = arith.constant 0 : i32
    %c0_i32_0 = arith.constant 0 : i32
    return %c0_i32, %arg0 : i32, i32
  }
}

module attributes {stable_mosaic.version = 11 : i64} {
  func.func @_conv_matmul_kernel(%arg0: i32, %arg1: memref<20x250xbf16, #tpu.memory_space<vmem>>, %arg2: memref<250x128xbf16, #tpu.memory_space<vmem>>, %arg3: memref<20x1xf32, #tpu.memory_space<vmem>>, %arg4: memref<20x128xf32, #tpu.memory_space<vmem>>) attributes {dimension_semantics = [#tpu.dimension_semantics<parallel>], iteration_bounds = array<i64: 1>, scalar_prefetch = 0 : i64, scratch_operands = 0 : i64, tpu.core_type = #tpu.core_type<tc>, window_params = [{pipeline_mode = #tpu.pipeline_mode<synchronous>, transform_indices = @transform_0, window_bounds = array<i64: 20, 250>}, {transform_indices = @transform_1, window_bounds = array<i64: 250, 128>}, {pipeline_mode = #tpu.pipeline_mode<synchronous>, transform_indices = @transform_2, window_bounds = array<i64: 20, 1>}, {transform_indices = @transform_3, window_bounds = array<i64: 20, 128>}]} {
    %c0 = arith.constant 0 : index
    %c0_0 = arith.constant 0 : index
    %0 = vector.load %arg1[%c0, %c0_0] : memref<20x250xbf16, #tpu.memory_space<vmem>>, vector<20x250xbf16>
    %c0_1 = arith.constant 0 : index
    %c0_2 = arith.constant 0 : index
    %1 = vector.load %arg2[%c0_1, %c0_2] : memref<250x128xbf16, #tpu.memory_space<vmem>>, vector<250x128xbf16>
    %cst = arith.constant dense<0.000000e+00> : vector<20x128xf32>
    %2 = tpu.matmul %0, %1, %cst {dimension_numbers = #tpu.dot_dimension_numbers<[1], [0], [0], [1], [0, 0, 1, 1], [], []>} : vector<20x250xbf16>, vector<250x128xbf16>, vector<20x128xf32> -> vector<20x128xf32>
    %c0_3 = arith.constant 0 : index
    %c0_4 = arith.constant 0 : index
    %3 = vector.load %arg3[%c0_3, %c0_4] : memref<20x1xf32, #tpu.memory_space<vmem>>, vector<20x1xf32>
    %4 = vector.broadcast %3 : vector<20x1xf32> to vector<20x128xf32>
    %5 = arith.addf %2, %4 : vector<20x128xf32>
    %cst_5 = arith.constant 0.000000e+00 : f32
    %6 = vector.broadcast %cst_5 : f32 to vector<20x128xf32>
    %7 = arith.maximumf %5, %6 : vector<20x128xf32>
    %c0_6 = arith.constant 0 : index
    %c0_7 = arith.constant 0 : index
    %8 = vector.load %arg4[%c0_6, %c0_7] : memref<20x128xf32, #tpu.memory_space<vmem>>, vector<20x128xf32>
    tpu.vector_store %arg4[%c0_6, %c0_7], %7 {strides = array<i32>} : memref<20x128xf32, #tpu.memory_space<vmem>>, vector<20x128xf32>,
    return
  }
  func.func @transform_0(%arg0: i32) -> (i32, i32) {
    %c0_i32 = arith.constant 0 : i32
    %c0_i32_0 = arith.constant 0 : i32
    %c0_i32_1 = arith.constant 0 : i32
    return %c0_i32, %c0_i32_0 : i32, i32
  }
  func.func @transform_1(%arg0: i32) -> (i32, i32) {
    %c0_i32 = arith.constant 0 : i32
    %c0_i32_0 = arith.constant 0 : i32
    return %c0_i32, %arg0 : i32, i32
  }
  func.func @transform_2(%arg0: i32) -> (i32, i32) {
    %c0_i32 = arith.constant 0 : i32
    %c0_i32_0 = arith.constant 0 : i32
    %c0_i32_1 = arith.constant 0 : i32
    return %c0_i32, %c0_i32_0 : i32, i32
  }
  func.func @transform_3(%arg0: i32) -> (i32, i32) {
    %c0_i32 = arith.constant 0 : i32
    %c0_i32_0 = arith.constant 0 : i32
    return %c0_i32, %arg0 : i32, i32
  }
}

module attributes {stable_mosaic.version = 11 : i64} {
  func.func @_head_kernel(%arg0: i32, %arg1: memref<2x320xf32, #tpu.memory_space<vmem>>, %arg2: memref<320x50xf32, #tpu.memory_space<vmem>>, %arg3: memref<1x50xf32, #tpu.memory_space<vmem>>, %arg4: memref<50x10xf32, #tpu.memory_space<vmem>>, %arg5: memref<1x10xf32, #tpu.memory_space<vmem>>, %arg6: memref<2x10xf32, #tpu.memory_space<vmem>>) attributes {dimension_semantics = [#tpu.dimension_semantics<arbitrary>], iteration_bounds = array<i64: 1>, scalar_prefetch = 0 : i64, scratch_operands = 0 : i64, tpu.core_type = #tpu.core_type<tc>, window_params = [{pipeline_mode = #tpu.pipeline_mode<synchronous>, transform_indices = @transform_0, window_bounds = array<i64: 2, 320>}, {pipeline_mode = #tpu.pipeline_mode<synchronous>, transform_indices = @transform_1, window_bounds = array<i64: 320, 50>}, {pipeline_mode = #tpu.pipeline_mode<synchronous>, transform_indices = @transform_2, window_bounds = array<i64: 1, 50>}, {pipeline_mode = #tpu.pipeline_mode<synchronous>, transform_indices = @transform_3, window_bounds = array<i64: 50, 10>}, {pipeline_mode = #tpu.pipeline_mode<synchronous>, transform_indices = @transform_4, window_bounds = array<i64: 1, 10>}, {pipeline_mode = #tpu.pipeline_mode<synchronous>, transform_indices = @transform_5, window_bounds = array<i64: 2, 10>}]} {
    %c0 = arith.constant 0 : index
    %c0_0 = arith.constant 0 : index
    %0 = vector.load %arg1[%c0, %c0_0] : memref<2x320xf32, #tpu.memory_space<vmem>>, vector<2x320xf32>
    %c0_1 = arith.constant 0 : index
    %c0_2 = arith.constant 0 : index
    %1 = vector.load %arg2[%c0_1, %c0_2] : memref<320x50xf32, #tpu.memory_space<vmem>>, vector<320x50xf32>
    %cst = arith.constant dense<0.000000e+00> : vector<2x50xf32>
    %2 = tpu.matmul %0, %1, %cst {dimension_numbers = #tpu.dot_dimension_numbers<[1], [0], [0], [1], [0, 0, 1, 1], [], []>} : vector<2x320xf32>, vector<320x50xf32>, vector<2x50xf32> -> vector<2x50xf32>
    %c0_3 = arith.constant 0 : index
    %c0_4 = arith.constant 0 : index
    %3 = vector.load %arg3[%c0_3, %c0_4] : memref<1x50xf32, #tpu.memory_space<vmem>>, vector<1x50xf32>
    %4 = vector.broadcast %3 : vector<1x50xf32> to vector<2x50xf32>
    %5 = arith.addf %2, %4 : vector<2x50xf32>
    %cst_5 = arith.constant 0.000000e+00 : f32
    %6 = vector.broadcast %cst_5 : f32 to vector<2x50xf32>
    %7 = arith.maximumf %5, %6 : vector<2x50xf32>
    %c0_6 = arith.constant 0 : index
    %c0_7 = arith.constant 0 : index
    %8 = vector.load %arg4[%c0_6, %c0_7] : memref<50x10xf32, #tpu.memory_space<vmem>>, vector<50x10xf32>
    %cst_8 = arith.constant dense<0.000000e+00> : vector<2x10xf32>
    %9 = tpu.matmul %7, %8, %cst_8 {dimension_numbers = #tpu.dot_dimension_numbers<[1], [0], [0], [1], [0, 0, 1, 1], [], []>} : vector<2x50xf32>, vector<50x10xf32>, vector<2x10xf32> -> vector<2x10xf32>
    %c0_9 = arith.constant 0 : index
    %c0_10 = arith.constant 0 : index
    %10 = vector.load %arg5[%c0_9, %c0_10] : memref<1x10xf32, #tpu.memory_space<vmem>>, vector<1x10xf32>
    %11 = vector.broadcast %10 : vector<1x10xf32> to vector<2x10xf32>
    %12 = arith.addf %9, %11 : vector<2x10xf32>
    %cst_11 = arith.constant dense<0xFF800000> : vector<2xf32>
    %13 = vector.multi_reduction <maximumf>, %12, %cst_11 [1] : vector<2x10xf32> to vector<2xf32>
    %14 = vector.shape_cast %13 : vector<2xf32> to vector<2x1xf32>
    %15 = vector.broadcast %14 : vector<2x1xf32> to vector<2x10xf32>
    %16 = arith.subf %12, %15 : vector<2x10xf32>
    %17 = math.exp %16 : vector<2x10xf32>
    %cst_12 = arith.constant dense<0.000000e+00> : vector<2xf32>
    %18 = vector.multi_reduction <add>, %17, %cst_12 [1] : vector<2x10xf32> to vector<2xf32>
    %19 = vector.shape_cast %18 : vector<2xf32> to vector<2x1xf32>
    %20 = math.log %19 : vector<2x1xf32>
    %21 = vector.broadcast %20 : vector<2x1xf32> to vector<2x10xf32>
    %22 = arith.subf %16, %21 : vector<2x10xf32>
    %c0_13 = arith.constant 0 : index
    %c0_14 = arith.constant 0 : index
    %23 = vector.load %arg6[%c0_13, %c0_14] : memref<2x10xf32, #tpu.memory_space<vmem>>, vector<2x10xf32>
    tpu.vector_store %arg6[%c0_13, %c0_14], %22 {strides = array<i32>} : memref<2x10xf32, #tpu.memory_space<vmem>>, vector<2x10xf32>,
    return
  }
  func.func @transform_0(%arg0: i32) -> (i32, i32) {
    %c0_i32 = arith.constant 0 : i32
    %c0_i32_0 = arith.constant 0 : i32
    %c0_i32_1 = arith.constant 0 : i32
    return %c0_i32, %c0_i32_0 : i32, i32
  }
  func.func @transform_1(%arg0: i32) -> (i32, i32) {
    %c0_i32 = arith.constant 0 : i32
    %c0_i32_0 = arith.constant 0 : i32
    %c0_i32_1 = arith.constant 0 : i32
    return %c0_i32, %c0_i32_0 : i32, i32
  }
  func.func @transform_2(%arg0: i32) -> (i32, i32) {
    %c0_i32 = arith.constant 0 : i32
    %c0_i32_0 = arith.constant 0 : i32
    %c0_i32_1 = arith.constant 0 : i32
    return %c0_i32, %c0_i32_0 : i32, i32
  }
  func.func @transform_3(%arg0: i32) -> (i32, i32) {
    %c0_i32 = arith.constant 0 : i32
    %c0_i32_0 = arith.constant 0 : i32
    %c0_i32_1 = arith.constant 0 : i32
    return %c0_i32, %c0_i32_0 : i32, i32
  }
  func.func @transform_4(%arg0: i32) -> (i32, i32) {
    %c0_i32 = arith.constant 0 : i32
    %c0_i32_0 = arith.constant 0 : i32
    %c0_i32_1 = arith.constant 0 : i32
    return %c0_i32, %c0_i32_0 : i32, i32
  }
  func.func @transform_5(%arg0: i32) -> (i32, i32) {
    %c0_i32 = arith.constant 0 : i32
    %c0_i32_0 = arith.constant 0 : i32
    %c0_i32_1 = arith.constant 0 : i32
    return %c0_i32, %c0_i32_0 : i32, i32
  }
}

</mosaic_0001>

<llo_original>
// kernel: net_forward.6
$region0: #{net_forward.6}
  #allocation0 [shape = 'u32[]', space=smem, size = 0x4, offset = 0x4, fixed_abs, tag = 'smem constant byte address 0x4 - core index']
  #allocation1 [shape = 'u32[72,128]{1,0:T(1,128)}', space=vmem, size = 0x9000, scoped, tag = 'internal scratch']
  %s0 = inlined_call_operand.vmem [shape: bf16[8,49], index: 0, kind: input, shape index: {}]
  %s1 = inlined_call_operand.vmem [shape: bf16[49,1024], index: 1, kind: input, shape index: {}]
  %s2 = inlined_call_operand.vmem [shape: f32[8,1], index: 2, kind: input, shape index: {}]
  %s3 = inlined_call_operand.vmem [shape: f32[8,1024], index: 3, kind: output, shape index: {}]
  %s4 = sld [smem:[#allocation0]]
  $region68: #{net_forward.6} parent=0
    _
  %s6 = ssub.s32 1, %s4
  %s7 = scalar_select 0, %s6, %s4
  $region1: #{net_forward.6} parent=0
    #allocation2 [shape = 'u8[114688]{0}', space=vmem, size = 0x1c000, scoped, tag = 'input window, operand 1']
    loop: start=0, step=1, limit=4
    $region2: #{net_forward.6} parent=1 // loop_pre_header
      _
    $region3: #{net_forward.6} parent=1 // loop_header
      %s9 = sphi 0, %s13
      %p10 = scmp.ge.s32.totalorder %s9, 4
      %s17 = sphi 0, %s17
      %s19 = sphi 0, %s17
      %s20 = sphi 0, %s19
      %s34 = sphi 0, %s20
      %s40 = sphi 0, %s42
      %s43 = sphi 0, %s40
      %s44 = sphi 0, %s43
      %s60 = sphi 0, %s44
      %s64 = sphi 0, %s64
      %s66 = sphi 0, %s64
      %s67 = sphi 0, %s66
      %s81 = sphi 0, %s67
      %s87 = sphi 0, %s89
      %s90 = sphi 0, %s87
      %s91 = sphi 0, %s90
      %s107 = sphi 0, %s91
    $region4: #{net_forward.6} parent=1 // loop_header_branch
      %12 = sbr.rel (%p10) target = $region8
    $region5: #{net_forward.6} parent=1 // loop_body
      %s14 = ssub.s32 %s9, 1
      %s15 = ssub.s32 %s9, 2
      %s16 = sadd.s32 %s9, 1
      %s18 = sadd.s32 %s17, 1
      %p21 = scmp.eq.s32.totalorder %s9, 1
      %p22 = scmp.ne.s32.totalorder %s17, %s19
      %p23 = scmp.eq.s32.totalorder %s9, 0
      %p24 = por %p22, %p23
      %p25 = scmp.ne.s32.totalorder %s17, %s19
      %p26 = scmp.eq.s32.totalorder %s14, 1
      %p27 = por %p25, %p26
      %p28 = scmp.ne.s32.totalorder %s19, %s20
      %p29 = scmp.eq.s32.totalorder %s14, 0
      %p30 = por %p28, %p29
      %p31 = scmp.ne.s32.totalorder %s19, %s20
      %p32 = scmp.eq.s32.totalorder %s15, 1
      %p33 = por %p31, %p32
      %p35 = scmp.ne.s32.totalorder %s20, %s34
      %p36 = scmp.eq.s32.totalorder %s15, 0
      %p37 = por %p35, %p36
      %s38 = ssub.s32 %s9, %s16
      %p39 = scmp.eq.s32.totalorder %s38, 0
      %s41 = sadd.s32 %s40, 1
      %s42 = scalar_select %p39, %s40, %s41
      %p45 = pneg %p39
      %p46 = scmp.eq.s32.totalorder %s9, 1
      %p47 = por %p45, %p46
      %p48 = scmp.ne.s32.totalorder %s40, %s43
      %p49 = scmp.eq.s32.totalorder %s9, 0
      %p50 = por %p48, %p49
      %p51 = scmp.ne.s32.totalorder %s40, %s43
      %p52 = scmp.eq.s32.totalorder %s14, 1
      %p53 = por %p51, %p52
      %p54 = scmp.ne.s32.totalorder %s43, %s44
      %p55 = scmp.eq.s32.totalorder %s14, 0
      %p56 = por %p54, %p55
      %p57 = scmp.ne.s32.totalorder %s43, %s44
      %p58 = scmp.eq.s32.totalorder %s15, 1
      %p59 = por %p57, %p58
      %p61 = scmp.ne.s32.totalorder %s44, %s60
      %p62 = scmp.eq.s32.totalorder %s15, 0
      %p63 = por %p61, %p62
      %s65 = sadd.s32 %s64, 1
      %p68 = scmp.eq.s32.totalorder %s9, 1
      %p69 = scmp.ne.s32.totalorder %s64, %s66
      %p70 = scmp.eq.s32.totalorder %s9, 0
      %p71 = por %p69, %p70
      %p72 = scmp.ne.s32.totalorder %s64, %s66
      %p73 = scmp.eq.s32.totalorder %s14, 1
      %p74 = por %p72, %p73
      %p75 = scmp.ne.s32.totalorder %s66, %s67
      %p76 = scmp.eq.s32.totalorder %s14, 0
      %p77 = por %p75, %p76
      %p78 = scmp.ne.s32.totalorder %s66, %s67
      %p79 = scmp.eq.s32.totalorder %s15, 1
      %p80 = por %p78, %p79
      %p82 = scmp.ne.s32.totalorder %s67, %s81
      %p83 = scmp.eq.s32.totalorder %s15, 0
      %p84 = por %p82, %p83
      %s85 = ssub.s32 %s9, %s16
      %p86 = scmp.eq.s32.totalorder %s85, 0
      %s88 = sadd.s32 %s87, 1
      %s89 = scalar_select %p86, %s87, %s88
      %p92 = pneg %p86
      %p93 = scmp.eq.s32.totalorder %s9, 1
      %p94 = por %p92, %p93
      %p95 = scmp.ne.s32.totalorder %s87, %s90
      %p96 = scmp.eq.s32.totalorder %s9, 0
      %p97 = por %p95, %p96
      %p98 = scmp.ne.s32.totalorder %s87, %s90
      %p99 = scmp.eq.s32.totalorder %s14, 1
      %p100 = por %p98, %p99
      %p101 = scmp.ne.s32.totalorder %s90, %s91
      %p102 = scmp.eq.s32.totalorder %s14, 0
      %p103 = por %p101, %p102
      %p104 = scmp.ne.s32.totalorder %s90, %s91
      %p105 = scmp.eq.s32.totalorder %s15, 1
      %p106 = por %p104, %p105
      %p108 = scmp.ne.s32.totalorder %s91, %s107
      %p109 = scmp.eq.s32.totalorder %s15, 0
      %p110 = por %p108, %p109
      %p111 = scmp.le.s32.totalorder 1, %s9
      %p112 = scmp.lt.s32.totalorder %s9, 3
      %p113 = pnand %p111, %p112
      %p114 = pneg %p113
      // Predicated region
      $region9: #{net_forward.6} parent=5 // pred_check
        _
      $region10: #{net_forward.6} parent=5 // pred_check_branch
        %116 = sbr.rel (%p113) target = $region12
      $region11: #{net_forward.6} parent=5 // pred_region
        %s117 = ssub.s32 %s9, 1
        // Predicated region
        $region13: #{net_forward.6} parent=11 // pred_check
          %p118 = pneg %p30
        $region14: #{net_forward.6} parent=11 // pred_check_branch
          %120 = sbr.rel (%p118) target = $region16
        $region15: #{net_forward.6} parent=11 // pred_region
          _
        $region16: #{net_forward.6} parent=11 // pred_fallthru
          _
        // Predicated region
        $region17: #{net_forward.6} parent=11 // pred_check
          %p121 = pneg %p77
        $region18: #{net_forward.6} parent=11 // pred_check_branch
          %123 = sbr.rel (%p121) target = $region20
        $region19: #{net_forward.6} parent=11 // pred_region
          _
        $region20: #{net_forward.6} parent=11 // pred_fallthru
          _
      $region12: #{net_forward.6} parent=5 // pred_fallthru
        _
      %p124 = scmp.lt.s32.totalorder %s9, 2
      // Predicated region
      $region21: #{net_forward.6} parent=5 // pred_check
        %p125 = pneg %p124
      $region22: #{net_forward.6} parent=5 // pred_check_branch
        %127 = sbr.rel (%p125) target = $region24
      $region23: #{net_forward.6} parent=5 // pred_region
        // Predicated region
        $region25: #{net_forward.6} parent=23 // pred_check
          %p128 = pneg %p50
        $region26: #{net_forward.6} parent=23 // pred_check_branch
          %130 = sbr.rel (%p128) target = $region28
        $region27: #{net_forward.6} parent=23 // pred_region
          %s131 = sand.u32 %s40, 1
          %s132 = sand.u32 %s40, 1
          %s133 = smul.addr %s132, 112
          %s134 = scalar_lea.vmem [#allocation2], %s133
          %s135 = smul.u32 4, %s9
          %s136 = smul.addr %s135, 4
          %s137 = scalar_lea.vmem %s1, %s136
          // Predicated region
          $region29: #{net_forward.6} parent=27 // pred_check
            _
          $region30: #{net_forward.6} parent=27 // pred_check_branch
            %139 = sbr.rel (0) target = $region32
          $region31: #{net_forward.6} parent=27 // pred_region
            // Predicated region
            $region33: #{net_forward.6} parent=31 // pred_check
              _
            $region34: #{net_forward.6} parent=31 // pred_check_branch
              %141 = sbr.rel (0) target = $region36
            $region35: #{net_forward.6} parent=31 // pred_region
              loop: start=0, step=1, limit=1
              $region37: #{net_forward.6} parent=35 // loop_pre_header
                _
              $region38: #{net_forward.6} parent=35 // loop_header
                %s143 = sphi 0, %s147
                %p144 = scmp.ge.s32.totalorder %s143, 1
                %s148 = sphi %s137, %s137
                %s149 = sphi %s134, %s134
              $region39: #{net_forward.6} parent=35 // loop_header_branch
                %146 = sbr.rel (%p144) target = $region43
              $region40: #{net_forward.6} parent=35 // loop_body
                %v150 = vld [vmem:[%s148] sm:$0xff]
                %151 = vst [vmem:[%s149] sm:$0xff] %v150
                %v152 = vld [vmem:[%s148 + $0x8] sm:$0xff]
                %153 = vst [vmem:[%s149 + $0x8] sm:$0xff] %v152
                %v154 = vld [vmem:[%s148 + $0x20] sm:$0xff]
                %155 = vst [vmem:[%s149 + $0x10] sm:$0xff] %v154
                %v156 = vld [vmem:[%s148 + $0x28] sm:$0xff]
                %157 = vst [vmem:[%s149 + $0x18] sm:$0xff] %v156
                %v158 = vld [vmem:[%s148 + $0x40] sm:$0xff]
                %159 = vst [vmem:[%s149 + $0x20] sm:$0xff] %v158
                %v160 = vld [vmem:[%s148 + $0x48] sm:$0xff]
                %161 = vst [vmem:[%s149 + $0x28] sm:$0xff] %v160
                %v162 = vld [vmem:[%s148 + $0x60] sm:$0xff]
                %163 = vst [vmem:[%s149 + $0x30] sm:$0xff] %v162
                %v164 = vld [vmem:[%s148 + $0x68] sm:$0xff]
                %165 = vst [vmem:[%s149 + $0x38] sm:$0xff] %v164
                %v166 = vld [vmem:[%s148 + $0x80] sm:$0xff]
                %167 = vst [vmem:[%s149 + $0x40] sm:$0xff] %v166
                %v168 = vld [vmem:[%s148 + $0x88] sm:$0xff]
                %169 = vst [vmem:[%s149 + $0x48] sm:$0xff] %v168
                %v170 = vld [vmem:[%s148 + $0xa0] sm:$0xff]
                %171 = vst [vmem:[%s149 + $0x50] sm:$0xff] %v170
                %v172 = vld [vmem:[%s148 + $0xa8] sm:$0xff]
                %173 = vst [vmem:[%s149 + $0x58] sm:$0xff] %v172
                %v174 = vld [vmem:[%s148 + $0xc0] sm:$0xff]
                %175 = vst [vmem:[%s149 + $0x60] sm:$0xff] %v174
                %v176 = vld [vmem:[%s148 + $0xc8] sm:$0xff]
                %177 = vst [vmem:[%s149 + $0x68] sm:$0xff] %v176
              $region41: #{net_forward.6} parent=35 // loop_footer
                %s147 = sadd.s32 1, %s143
              $region42: #{net_forward.6} parent=35 // loop_footer_branch
                %142 = sbr.rel target = $region38
              $region43: #{net_forward.6} parent=35 // loop_exit
                _
            $region36: #{net_forward.6} parent=31 // pred_fallthru
              _
            // Predicated region
            $region44: #{net_forward.6} parent=31 // pred_check
              _
            $region45: #{net_forward.6} parent=31 // pred_check_branch
              %179 = sbr.rel target = $region47
            $region46: #{net_forward.6} parent=31 // pred_region
              _
            $region47: #{net_forward.6} parent=31 // pred_fallthru
              _
          $region32: #{net_forward.6} parent=27 // pred_fallthru
            _
          %180 = vnop
        $region28: #{net_forward.6} parent=23 // pred_fallthru
          _
      $region24: #{net_forward.6} parent=5 // pred_fallthru
        _
      %p181 = scmp.le.s32.totalorder 1, %s9
      %p182 = scmp.lt.s32.totalorder %s9, 3
      %p183 = pnand %p181, %p182
      %p184 = pneg %p183
      // Predicated region
      $region48: #{net_forward.6} parent=5 // pred_check
        _
      $region49: #{net_forward.6} parent=5 // pred_check_branch
        %186 = sbr.rel (%p183) target = $region51
      $region50: #{net_forward.6} parent=5 // pred_region
        %s187 = ssub.s32 %s9, 1
        %s188 = sand.u32 %s43, 1
        %s189 = sand.u32 %s43, 1
        %s190 = smul.addr %s189, 112
        %s191 = scalar_lea.vmem [#allocation2], %s190
        // Predicated region
        $region52: #{net_forward.6} parent=50 // pred_check
          %p192 = pneg %p56
        $region53: #{net_forward.6} parent=50 // pred_check_branch
          %194 = sbr.rel (%p192) target = $region55
        $region54: #{net_forward.6} parent=50 // pred_region
          _
        $region55: #{net_forward.6} parent=50 // pred_fallthru
          _
        %p195 = pneg %p30
        %p196 = pneg %p27
        %s197 = sand.u32 %s43, 1
        %s198 = sand.u32 %s43, 1
        %s199 = smul.addr %s198, 112
        %s200 = scalar_lea.vmem [#allocation2], %s199
        %p201 = pneg %p56
        %p202 = pneg %p53
        %p203 = pneg %p77
        %p204 = pneg %p74
        %p205 = pneg %p103
        %p206 = pneg %p100
        %s207 = smul.u32 4, %s14
        %p208 = scmp.lt.s32.totalorder %s207, 7
        %s209 = scalar_select %p208, %s207, 7
        %s210 = smul.addr %s209, 8
        %s211 = scalar_lea.vmem %s3, %s210
        %s212 = smul.u32 4, %s14
        %s213 = smul.u32 4, %s14
        %p214 = scmp.lt.s32.totalorder %s213, 7
        %s215 = scalar_select %p214, %s213, 7
        %s216 = smul.addr %s215, 8
        %s217 = scalar_lea.vmem %s3, %s216
        %s218 = smul.u32 4, %s14
        %v220 = vld [vmem:[%s0] sm:$0xf]
        %v221 = vld [vmem:[%s191] sm:$0xff]
        %v222 = vld [vmem:[%s191 + $0x8] sm:$0xff]
        %v223 = vld [vmem:[%s191 + $0x10] sm:$0xff]
        %v224 = vld [vmem:[%s191 + $0x18] sm:$0xff]
        %v225 = vld [vmem:[%s191 + $0x20] sm:$0xff]
        %v226 = vld [vmem:[%s191 + $0x28] sm:$0xff]
        %v227 = vld [vmem:[%s191 + $0x30] sm:$0xff]
        %v228 = vld [vmem:[%s191 + $0x38] sm:$0xff]
        %v229 = vld [vmem:[%s191 + $0x40] sm:$0xff]
        %v230 = vld [vmem:[%s191 + $0x48] sm:$0xff]
        %v231 = vld [vmem:[%s191 + $0x50] sm:$0xff]
        %v232 = vld [vmem:[%s191 + $0x58] sm:$0xff]
        %v233 = vld [vmem:[%s191 + $0x60] sm:$0x11]
        %v234 = vld [vmem:[%s191 + $0x68] sm:$0x11]
        %v235 = vld [vmem:[%s2] sm:$0xff]
        %237 = vset.pattern.permute.xlu0 0
        %238 = vperm.xlu0 %237, %v235
        %v239 = vpop.permute.xlu0 %238
        %v255 = vunpack.c.l.b16 %v221
        %v256 = vunpack.c.h.b16 %v221
        %v257 = vunpack.c.l.b16 %v222
        %v258 = vunpack.c.h.b16 %v222
        %v259 = vunpack.c.l.b16 %v223
        %v260 = vunpack.c.h.b16 %v223
        %v261 = vunpack.c.l.b16 %v224
        %v262 = vunpack.c.h.b16 %v224
        %v263 = vunpack.c.l.b16 %v225
        %v264 = vunpack.c.h.b16 %v225
        %v265 = vunpack.c.l.b16 %v226
        %v266 = vunpack.c.h.b16 %v226
        %v267 = vunpack.c.l.b16 %v227
        %v268 = vunpack.c.h.b16 %v227
        %v269 = vunpack.c.l.b16 %v228
        %v270 = vunpack.c.h.b16 %v228
        %v271 = vunpack.c.l.b16 %v229
        %v272 = vunpack.c.h.b16 %v229
        %v273 = vunpack.c.l.b16 %v230
        %v274 = vunpack.c.h.b16 %v230
        %v275 = vunpack.c.l.b16 %v231
        %v276 = vunpack.c.h.b16 %v231
        %v277 = vunpack.c.l.b16 %v232
        %v278 = vunpack.c.h.b16 %v232
        %v279 = vunpack.c.l.b16 %v233
        %v280 = vunpack.c.h.b16 %v233
        %v281 = vunpack.c.l.b16 %v234
        %v282 = vunpack.c.h.b16 %v234
        %v283 = vpack.c.b16 %v259, %v255
        %v284 = vpack.c.b16 %v260, %v256
        %v285 = vpack.c.b16 %v261, %v257
        %v286 = vpack.c.b16 %v262, %v258
        %v287 = vpack.c.b16 %v267, %v263
        %v288 = vpack.c.b16 %v268, %v264
        %v289 = vpack.c.b16 %v269, %v265
        %v290 = vpack.c.b16 %v270, %v266
        %v291 = vpack.c.b16 %v275, %v271
        %v292 = vpack.c.b16 %v276, %v272
        %v293 = vpack.c.b16 %v277, %v273
        %v294 = vpack.c.b16 %v278, %v274
        %v295 = vpack.c.b16 %v279, %v279
        %v296 = vpack.c.b16 %v280, %v280
        %v297 = vpack.c.b16 %v281, %v281
        %v298 = vpack.c.b16 %v282, %v282
        %vm311 = vcmask 400384
        %v313 = vsel %vm311, %v220, 0
        %vm315 = vcmask 1040384
        %v316 = vsel 0, 4294967295, 65535
        %v317 = vsel %vm315, %v316, 0
        %v319 = vand.u32 %v295, %v317
        %v322 = vand.u32 %v296, %v317
        %v325 = vand.u32 %v297, %v317
        %v328 = vand.u32 %v298, %v317
        %330 = vmatpush.bf16.msra.mxu0 0
        %331 = vmatpush.bf16.msra.mxu0 0
        %332 = vmatpush.bf16.msra.mxu0 0
        %333 = vmatpush.bf16.msra.mxu0 0
        %334 = vmatpush.bf16.msra.mxu0 %v319
        %335 = vmatpush.bf16.msra.mxu0 %v291
        %336 = vmatpush.bf16.msra.mxu0 %v287
        %337 = vmatpush.bf16.msra.mxu0 %v283
        %338 = vmatmul.bf16.gmra.mxu0 %v313
        %v339 = vpop.f32.mrf.mxu0
        %v340 = vadd.f32 %v239, %v339
        %v341 = vpop.f32.mrf.mxu0
        %342 = vdwg.mxu0
        %343 = vmatpush.bf16.msra.mxu0 0
        %344 = vmatpush.bf16.msra.mxu0 0
        %345 = vmatpush.bf16.msra.mxu0 0
        %346 = vmatpush.bf16.msra.mxu0 0
        %347 = vmatpush.bf16.msra.mxu0 %v322
        %348 = vmatpush.bf16.msra.mxu0 %v292
        %349 = vmatpush.bf16.msra.mxu0 %v288
        %350 = vmatpush.bf16.msra.mxu0 %v284
        %351 = vmatmul.bf16.gmra.mxu0 %v313
        %v352 = vpop.f32.mrf.mxu0
        %v353 = vadd.f32 %v239, %v352
        %v354 = vpop.f32.mrf.mxu0
        %355 = vdwg.mxu0
        %356 = vmatpush.bf16.msra.mxu0 0
        %357 = vmatpush.bf16.msra.mxu0 0
        %358 = vmatpush.bf16.msra.mxu0 0
        %359 = vmatpush.bf16.msra.mxu0 0
        %360 = vmatpush.bf16.msra.mxu0 %v325
        %361 = vmatpush.bf16.msra.mxu0 %v293
        %362 = vmatpush.bf16.msra.mxu0 %v289
        %363 = vmatpush.bf16.msra.mxu0 %v285
        %364 = vmatmul.bf16.gmra.mxu0 %v313
        %v365 = vpop.f32.mrf.mxu0
        %v366 = vadd.f32 %v239, %v365
        %v367 = vpop.f32.mrf.mxu0
        %368 = vdwg.mxu0
        %369 = vmatpush.bf16.msra.mxu0 0
        %370 = vmatpush.bf16.msra.mxu0 0
        %371 = vmatpush.bf16.msra.mxu0 0
        %372 = vmatpush.bf16.msra.mxu0 0
        %373 = vmatpush.bf16.msra.mxu0 %v328
        %374 = vmatpush.bf16.msra.mxu0 %v294
        %375 = vmatpush.bf16.msra.mxu0 %v290
        %376 = vmatpush.bf16.msra.mxu0 %v286
        %377 = vmatmul.bf16.gmra.mxu0 %v313
        %v378 = vpop.f32.mrf.mxu0
        %v379 = vadd.f32 %v239, %v378
        %v380 = vpop.f32.mrf.mxu0
        %381 = vdwg.mxu0
        %v382 = vmax.f32 %v340, 0.0
        %v383 = vmax.f32 %v353, 0.0
        %v384 = vmax.f32 %v366, 0.0
        %v385 = vmax.f32 %v379, 0.0
        %386 = vst [vmem:[%s217] sm:$0xff] %v382
        %387 = vst [vmem:[%s217 + $0x8] sm:$0xff] %v383
        %388 = vst [vmem:[%s217 + $0x10] sm:$0xff] %v384
        %389 = vst [vmem:[%s217 + $0x18] sm:$0xff] %v385
        %s390 = smul.u32 4, %s14
        %p391 = scmp.lt.s32.totalorder %s390, 7
        %s392 = scalar_select %p391, %s390, 7
        %s393 = smul.addr %s392, 8
        %s394 = scalar_lea.vmem %s3, %s393
        // Predicated region
        $region56: #{net_forward.6} parent=50 // pred_check
          %p395 = pneg %p100
        $region57: #{net_forward.6} parent=50 // pred_check_branch
          %397 = sbr.rel (%p395) target = $region59
        $region58: #{net_forward.6} parent=50 // pred_region
          %s398 = smul.u32 4, %s14
        $region59: #{net_forward.6} parent=50 // pred_fallthru
          _
      $region51: #{net_forward.6} parent=5 // pred_fallthru
        _
      %p399 = scmp.le.s32.totalorder 2, %s9
      // Predicated region
      $region60: #{net_forward.6} parent=5 // pred_check
        %p400 = pneg %p399
      $region61: #{net_forward.6} parent=5 // pred_check_branch
        %402 = sbr.rel (%p400) target = $region63
      $region62: #{net_forward.6} parent=5 // pred_region
        %s403 = ssub.s32 %s9, 2
        // Predicated region
        $region64: #{net_forward.6} parent=62 // pred_check
          %p404 = pneg %p106
        $region65: #{net_forward.6} parent=62 // pred_check_branch
          %406 = sbr.rel (%p404) target = $region67
        $region66: #{net_forward.6} parent=62 // pred_region
          %s407 = smul.u32 4, %s15
          %p408 = scmp.lt.s32.totalorder %s407, 7
          %s409 = scalar_select %p408, %s407, 7
          %s410 = smul.addr %s409, 8
          %s411 = scalar_lea.vmem %s3, %s410
        $region67: #{net_forward.6} parent=62 // pred_fallthru
          _
      $region63: #{net_forward.6} parent=5 // pred_fallthru
        _
    $region6: #{net_forward.6} parent=1 // loop_footer
      %s13 = sadd.s32 1, %s9
    $region7: #{net_forward.6} parent=1 // loop_footer_branch
      %8 = sbr.rel target = $region3
    $region8: #{net_forward.6} parent=1 // loop_exit
      _

// kernel: net_forward.7
$region0: #{net_forward.7}
  #allocation0 [shape = 'u32[]', space=smem, size = 0x4, offset = 0x4, fixed_abs, tag = 'smem constant byte address 0x4 - core index']
  #allocation1 [shape = 'u32[72,128]{1,0:T(1,128)}', space=vmem, size = 0x9000, scoped, tag = 'internal scratch']
  %s0 = inlined_call_operand.vmem [shape: bf16[10,200], index: 0, kind: input, shape index: {}]
  %s1 = inlined_call_operand.vmem [shape: bf16[200,128], index: 1, kind: input, shape index: {}]
  %s2 = inlined_call_operand.vmem [shape: f32[10,1], index: 2, kind: input, shape index: {}]
  %s3 = inlined_call_operand.vmem [shape: f32[10,128], index: 3, kind: output, shape index: {}]
  %s4 = sld [smem:[#allocation0]]
  $region22: #{net_forward.7} parent=0
    _
  %s6 = ssub.s32 1, %s4
  %s7 = scalar_select 0, %s6, %s4
  // Predicated region
  $region2: #{net_forward.7} parent=0 // pred_check
    _
  $region3: #{net_forward.7} parent=0 // pred_check_branch
    %9 = sbr.rel (0) target = $region5
  $region4: #{net_forward.7} parent=0 // pred_region
    _
  $region5: #{net_forward.7} parent=0 // pred_fallthru
    _
  // Predicated region
  $region6: #{net_forward.7} parent=0 // pred_check
    _
  $region7: #{net_forward.7} parent=0 // pred_check_branch
    %11 = sbr.rel (0) target = $region9
  $region8: #{net_forward.7} parent=0 // pred_region
    _
  $region9: #{net_forward.7} parent=0 // pred_fallthru
    _
  // Predicated region
  $region10: #{net_forward.7} parent=0 // pred_check
    _
  $region11: #{net_forward.7} parent=0 // pred_check_branch
    %13 = sbr.rel (0) target = $region13
  $region12: #{net_forward.7} parent=0 // pred_region
    _
  $region13: #{net_forward.7} parent=0 // pred_fallthru
    _
  %v15 = vld [vmem:[%s0] sm:$0xff]
  %v16 = vld [vmem:[%s0 + $0x8] sm:$0x11]
  %v17 = vld [vmem:[%s1] sm:$0xf]
  %v18 = vld [vmem:[%s1 + $0x4] sm:$0xf]
  %v19 = vld [vmem:[%s1 + $0x8] sm:$0xf]
  %v20 = vld [vmem:[%s1 + $0xc] sm:$0xf]
  %v21 = vld [vmem:[%s1 + $0x10] sm:$0xf]
  %v22 = vld [vmem:[%s1 + $0x14] sm:$0xf]
  %v23 = vld [vmem:[%s1 + $0x18] sm:$0xf]
  %v24 = vld [vmem:[%s1 + $0x1c] sm:$0xf]
  %v25 = vld [vmem:[%s1 + $0x20] sm:$0xf]
  %v26 = vld [vmem:[%s1 + $0x24] sm:$0xf]
  %v27 = vld [vmem:[%s1 + $0x28] sm:$0xf]
  %v28 = vld [vmem:[%s1 + $0x2c] sm:$0xf]
  %v29 = vld [vmem:[%s1 + $0x30] sm:$0xf]
  %v30 = vld [vmem:[%s1 + $0x34] sm:$0xf]
  %v31 = vld [vmem:[%s1 + $0x38] sm:$0xf]
  %v32 = vld [vmem:[%s1 + $0x3c] sm:$0xf]
  %v33 = vld [vmem:[%s1 + $0x40] sm:$0xf]
  %v34 = vld [vmem:[%s1 + $0x44] sm:$0xf]
  %v35 = vld [vmem:[%s1 + $0x48] sm:$0xf]
  %v36 = vld [vmem:[%s1 + $0x4c] sm:$0xf]
  %v37 = vld [vmem:[%s1 + $0x50] sm:$0xf]
  %v38 = vld [vmem:[%s1 + $0x54] sm:$0xf]
  %v39 = vld [vmem:[%s1 + $0x58] sm:$0xf]
  %v40 = vld [vmem:[%s1 + $0x5c] sm:$0xf]
  %v41 = vld [vmem:[%s1 + $0x60] sm:$0xf]
  %v42 = vld [vmem:[%s2] sm:$0xff]
  %v43 = vld [vmem:[%s2 + $0x8] sm:$0x3]
  %45 = vset.pattern.permute.xlu0 0
  %46 = vperm.xlu0 %45, %v42
  %v47 = vpop.permute.xlu0 %46
  %50 = vset.pattern.permute.xlu0 0
  %51 = vperm.xlu0 %50, %v43
  %v52 = vpop.permute.xlu0 %51
  %v56 = vunpack.c.l.b16 %v15
  %v57 = vunpack.c.h.b16 %v15
  %v58 = vunpack.c.l.b16 %v16
  %v59 = vunpack.c.h.b16 %v16
  %v60 = vpack.c.b16 %v58, %v56
  %v61 = vpack.c.b16 %v59, %v57
  %v88 = vunpack.c.l.b16 %v17
  %v89 = vunpack.c.l.b16 %v18
  %v90 = vunpack.c.l.b16 %v19
  %v91 = vunpack.c.l.b16 %v20
  %v92 = vunpack.c.l.b16 %v21
  %v93 = vunpack.c.l.b16 %v22
  %v94 = vunpack.c.l.b16 %v23
  %v95 = vunpack.c.l.b16 %v24
  %v96 = vunpack.c.l.b16 %v25
  %v97 = vunpack.c.l.b16 %v26
  %v98 = vunpack.c.l.b16 %v27
  %v99 = vunpack.c.l.b16 %v28
  %v100 = vunpack.c.l.b16 %v29
  %v101 = vunpack.c.l.b16 %v30
  %v102 = vunpack.c.l.b16 %v31
  %v103 = vunpack.c.l.b16 %v32
  %v104 = vunpack.c.l.b16 %v33
  %v105 = vunpack.c.l.b16 %v34
  %v106 = vunpack.c.l.b16 %v35
  %v107 = vunpack.c.l.b16 %v36
  %v108 = vunpack.c.l.b16 %v37
  %v109 = vunpack.c.l.b16 %v38
  %v110 = vunpack.c.l.b16 %v39
  %v111 = vunpack.c.l.b16 %v40
  %v112 = vunpack.c.l.b16 %v41
  %v113 = vpack.c.b16 %v89, %v88
  %v114 = vpack.c.b16 %v91, %v90
  %v115 = vpack.c.b16 %v93, %v92
  %v116 = vpack.c.b16 %v95, %v94
  %v117 = vpack.c.b16 %v97, %v96
  %v118 = vpack.c.b16 %v99, %v98
  %v119 = vpack.c.b16 %v101, %v100
  %v120 = vpack.c.b16 %v103, %v102
  %v121 = vpack.c.b16 %v105, %v104
  %v122 = vpack.c.b16 %v107, %v106
  %v123 = vpack.c.b16 %v109, %v108
  %v124 = vpack.c.b16 %v111, %v110
  %v125 = vpack.c.b16 %v112, %v112
  %vm138 = vcmask 588800
  %v140 = vsel %vm138, %v61, 0
  %vm142 = vcmask 1043456
  %v144 = vsel %vm142, %v125, 0
  %146 = vmatpush.bf16.msra.mxu0 %v120
  %147 = vmatpush.bf16.msra.mxu0 %v119
  %148 = vmatpush.bf16.msra.mxu0 %v118
  %149 = vmatpush.bf16.msra.mxu0 %v117
  %150 = vmatpush.bf16.msra.mxu0 %v116
  %151 = vmatpush.bf16.msra.mxu0 %v115
  %152 = vmatpush.bf16.msra.mxu0 %v114
  %153 = vmatpush.bf16.msra.mxu0 %v113
  %154 = vmatmul.bf16.gmra.mxu0 %v60
  %v155 = vpop.f32.mrf.mxu0
  %v156 = vadd.f32 %v47, %v155
  %v157 = vpop.f32.mrf.mxu0
  %v158 = vadd.f32 %v52, %v157
  %159 = vdwg.mxu0
  %160 = vmatpush.bf16.msra.mxu0 0
  %161 = vmatpush.bf16.msra.mxu0 0
  %162 = vmatpush.bf16.msra.mxu0 0
  %163 = vmatpush.bf16.msra.mxu0 %v144
  %164 = vmatpush.bf16.msra.mxu0 %v124
  %165 = vmatpush.bf16.msra.mxu0 %v123
  %166 = vmatpush.bf16.msra.mxu0 %v122
  %167 = vmatpush.bf16.msra.mxu0 %v121
  %168 = vmatmul.bf16.gmra.mxu0 %v140
  %v169 = vpop.f32.mrf.mxu0
  %v170 = vadd.f32 %v156, %v169
  %v171 = vpop.f32.mrf.mxu0
  %v172 = vadd.f32 %v158, %v171
  %173 = vdwg.mxu0
  %v174 = vmax.f32 %v170, 0.0
  %v175 = vmax.f32 %v172, 0.0
  %176 = vst [vmem:[%s3] sm:$0xff] %v174
  %177 = vst [vmem:[%s3 + $0x8] sm:$0x3] %v175
  // Predicated region
  $region14: #{net_forward.7} parent=0 // pred_check
    _
  $region15: #{net_forward.7} parent=0 // pred_check_branch
    %179 = sbr.rel (0) target = $region17
  $region16: #{net_forward.7} parent=0 // pred_region
    _
  $region17: #{net_forward.7} parent=0 // pred_fallthru
    _
  // Predicated region
  $region18: #{net_forward.7} parent=0 // pred_check
    _
  $region19: #{net_forward.7} parent=0 // pred_check_branch
    %181 = sbr.rel (0) target = $region21
  $region20: #{net_forward.7} parent=0 // pred_region
    _
  $region21: #{net_forward.7} parent=0 // pred_fallthru
    _

// kernel: net_forward.8
$region0: #{net_forward.8}
  #allocation0 [shape = 'u32[]', space=smem, size = 0x4, offset = 0x4, fixed_abs, tag = 'smem constant byte address 0x4 - core index']
  #allocation1 [shape = 'u32[72,128]{1,0:T(1,128)}', space=vmem, size = 0x9000, scoped, tag = 'internal scratch']
  %s0 = inlined_call_operand.vmem [shape: f32[2,90], index: 0, kind: input, shape index: {}]
  %s1 = inlined_call_operand.vmem [shape: f32[90,32], index: 1, kind: input, shape index: {}]
  %s2 = inlined_call_operand.vmem [shape: f32[1,32], index: 2, kind: input, shape index: {}]
  %s3 = inlined_call_operand.vmem [shape: f32[32,6], index: 3, kind: input, shape index: {}]
  %s4 = inlined_call_operand.vmem [shape: f32[1,6], index: 4, kind: input, shape index: {}]
  %s5 = inlined_call_operand.vmem [shape: f32[2,6], index: 5, kind: output, shape index: {}]
  %s6 = sld [smem:[#allocation0]]
  $region30: #{net_forward.8} parent=0
    _
  %s8 = ssub.s32 1, %s6
  %s9 = scalar_select 0, %s8, %s6
  // Predicated region
  $region2: #{net_forward.8} parent=0 // pred_check
    _
  $region3: #{net_forward.8} parent=0 // pred_check_branch
    %11 = sbr.rel (0) target = $region5
  $region4: #{net_forward.8} parent=0 // pred_region
    _
  $region5: #{net_forward.8} parent=0 // pred_fallthru
    _
  // Predicated region
  $region6: #{net_forward.8} parent=0 // pred_check
    _
  $region7: #{net_forward.8} parent=0 // pred_check_branch
    %13 = sbr.rel (0) target = $region9
  $region8: #{net_forward.8} parent=0 // pred_region
    _
  $region9: #{net_forward.8} parent=0 // pred_fallthru
    _
  // Predicated region
  $region10: #{net_forward.8} parent=0 // pred_check
    _
  $region11: #{net_forward.8} parent=0 // pred_check_branch
    %15 = sbr.rel (0) target = $region13
  $region12: #{net_forward.8} parent=0 // pred_region
    _
  $region13: #{net_forward.8} parent=0 // pred_fallthru
    _
  // Predicated region
  $region14: #{net_forward.8} parent=0 // pred_check
    _
  $region15: #{net_forward.8} parent=0 // pred_check_branch
    %17 = sbr.rel (0) target = $region17
  $region16: #{net_forward.8} parent=0 // pred_region
    _
  $region17: #{net_forward.8} parent=0 // pred_fallthru
    _
  // Predicated region
  $region18: #{net_forward.8} parent=0 // pred_check
    _
  $region19: #{net_forward.8} parent=0 // pred_check_branch
    %19 = sbr.rel (0) target = $region21
  $region20: #{net_forward.8} parent=0 // pred_region
    _
  $region21: #{net_forward.8} parent=0 // pred_fallthru
    _
  %v20 = vld [vmem:[%s0] sm:$0x3]
  %v21 = vld [vmem:[%s1] sm:$0xff]
  %v22 = vld [vmem:[%s1 + $0x8] sm:$0xff]
  %v23 = vld [vmem:[%s1 + $0x10] sm:$0xff]
  %v24 = vld [vmem:[%s1 + $0x18] sm:$0xff]
  %v25 = vld [vmem:[%s1 + $0x20] sm:$0xff]
  %v26 = vld [vmem:[%s1 + $0x28] sm:$0xff]
  %v27 = vld [vmem:[%s1 + $0x30] sm:$0xff]
  %v28 = vld [vmem:[%s1 + $0x38] sm:$0xff]
  %v29 = vld [vmem:[%s1 + $0x40] sm:$0xff]
  %v30 = vld [vmem:[%s1 + $0x48] sm:$0xff]
  %v31 = vld [vmem:[%s1 + $0x50] sm:$0xff]
  %v32 = vld [vmem:[%s1 + $0x58] sm:$0x3]
  %v33 = vld [vmem:[%s2] sm:$0x1]
  %v35 = vperm.slane %v33, 0
  %vm37 = vcmask 736256
  %v39 = vsel %vm37, %v20, 0
  %vm41 = vcmask 1041408
  %v43 = vsel %vm41, %v32, 0
  %45 = vmatpush.msra.mxu0 0.0
  %46 = vmatpush.msra.mxu0 0.0
  %47 = vmatpush.msra.mxu0 0.0
  %48 = vmatpush.msra.mxu0 0.0
  %49 = vmatpush.msra.mxu0 %v43
  %50 = vmatpush.msra.mxu0 %v31
  %51 = vmatpush.msra.mxu0 %v30
  %52 = vmatpush.msra.mxu0 %v29
  %53 = vmatpush.msra.mxu0 %v28
  %54 = vmatpush.msra.mxu0 %v27
  %55 = vmatpush.msra.mxu0 %v26
  %56 = vmatpush.msra.mxu0 %v25
  %57 = vmatpush.msra.mxu0 %v24
  %58 = vmatpush.msra.mxu0 %v23
  %59 = vmatpush.msra.mxu0 %v22
  %60 = vmatpush.msra.mxu0 %v21
  %61 = vmatmul.f32.gmra.mxu0 %v39
  %v62 = vpop.f32.mrf.mxu0
  %v63 = vadd.f32 %v35, %v62
  %64 = vdwg.mxu0
  %v65 = vmax.f32 %v63, 0.0
  %v66 = vld [vmem:[%s3] sm:$0xff]
  %v67 = vld [vmem:[%s3 + $0x8] sm:$0xff]
  %v68 = vld [vmem:[%s3 + $0x10] sm:$0xff]
  %v69 = vld [vmem:[%s3 + $0x18] sm:$0xff]
  %v70 = vld [vmem:[%s4] sm:$0x1]
  %v72 = vperm.slane %v70, 0
  %vm74 = vcmask 261120
  %v76 = vsel %vm74, %v65, 0
  %78 = vmatpush.msra.mxu0 0.0
  %79 = vmatpush.msra.mxu0 0.0
  %80 = vmatpush.msra.mxu0 0.0
  %81 = vmatpush.msra.mxu0 0.0
  %82 = vmatpush.msra.mxu0 0.0
  %83 = vmatpush.msra.mxu0 0.0
  %84 = vmatpush.msra.mxu0 0.0
  %85 = vmatpush.msra.mxu0 0.0
  %86 = vmatpush.msra.mxu0 0.0
  %87 = vmatpush.msra.mxu0 0.0
  %88 = vmatpush.msra.mxu0 0.0
  %89 = vmatpush.msra.mxu0 0.0
  %90 = vmatpush.msra.mxu0 %v69
  %91 = vmatpush.msra.mxu0 %v68
  %92 = vmatpush.msra.mxu0 %v67
  %93 = vmatpush.msra.mxu0 %v66
  %94 = vmatmul.f32.gmra.mxu0 %v76
  %v95 = vpop.f32.mrf.mxu0
  %v96 = vadd.f32 %v72, %v95
  %97 = vdwg.mxu0
  %vm98 = vcmask 41984
  %99 = vst.msk [vmem:[%s5] sm:$0x3] %vm98, %v96
  // Predicated region
  $region22: #{net_forward.8} parent=0 // pred_check
    _
  $region23: #{net_forward.8} parent=0 // pred_check_branch
    %101 = sbr.rel (0) target = $region25
  $region24: #{net_forward.8} parent=0 // pred_region
    _
  $region25: #{net_forward.8} parent=0 // pred_fallthru
    _
  // Predicated region
  $region26: #{net_forward.8} parent=0 // pred_check
    _
  $region27: #{net_forward.8} parent=0 // pred_check_branch
    %103 = sbr.rel (0) target = $region29
  $region28: #{net_forward.8} parent=0 // pred_region
    _
  $region29: #{net_forward.8} parent=0 // pred_fallthru
    _

// kernel: net_forward.9
$region0: #{net_forward.9}
  #allocation0 [shape = 'u32[]', space=smem, size = 0x4, offset = 0x4, fixed_abs, tag = 'smem constant byte address 0x4 - core index']
  #allocation1 [shape = 'u32[72,128]{1,0:T(1,128)}', space=vmem, size = 0x9000, scoped, tag = 'internal scratch']
  %s0 = inlined_call_operand.vmem [shape: bf16[10,25], index: 0, kind: input, shape index: {}]
  %s1 = inlined_call_operand.vmem [shape: bf16[25,1152], index: 1, kind: input, shape index: {}]
  %s2 = inlined_call_operand.vmem [shape: f32[10,1], index: 2, kind: input, shape index: {}]
  %s3 = inlined_call_operand.vmem [shape: f32[10,1152], index: 3, kind: output, shape index: {}]
  %s4 = sld [smem:[#allocation0]]
  $region90: #{net_forward.9} parent=0
    _
  %s6 = ssub.s32 1, %s4
  %s7 = scalar_select 0, %s6, %s4
  $region1: #{net_forward.9} parent=0
    #allocation2 [shape = 'u8[49152]{0}', space=vmem, size = 0xc000, scoped, tag = 'input window, operand 1']
    #allocation3 [shape = 'u8[49152]{0}', space=vmem, size = 0xc000, scoped, tag = 'output window, operand 0']
    loop: start=0, step=1, limit=5
    $region2: #{net_forward.9} parent=1 // loop_pre_header
      _
    $region3: #{net_forward.9} parent=1 // loop_header
      %s9 = sphi 0, %s13
      %p10 = scmp.ge.s32.totalorder %s9, 5
      %s17 = sphi 0, %s17
      %s19 = sphi 0, %s17
      %s20 = sphi 0, %s19
      %s34 = sphi 0, %s20
      %s40 = sphi 0, %s42
      %s43 = sphi 0, %s40
      %s44 = sphi 0, %s43
      %s60 = sphi 0, %s44
      %s64 = sphi 0, %s64
      %s66 = sphi 0, %s64
      %s67 = sphi 0, %s66
      %s81 = sphi 0, %s67
      %s87 = sphi 0, %s89
      %s90 = sphi 0, %s87
      %s91 = sphi 0, %s90
      %s107 = sphi 0, %s91
    $region4: #{net_forward.9} parent=1 // loop_header_branch
      %12 = sbr.rel (%p10) target = $region8
    $region5: #{net_forward.9} parent=1 // loop_body
      %s14 = ssub.s32 %s9, 1
      %s15 = ssub.s32 %s9, 2
      %s16 = sadd.s32 %s9, 1
      %s18 = sadd.s32 %s17, 1
      %p21 = scmp.eq.s32.totalorder %s9, 2
      %p22 = scmp.ne.s32.totalorder %s17, %s19
      %p23 = scmp.eq.s32.totalorder %s9, 0
      %p24 = por %p22, %p23
      %p25 = scmp.ne.s32.totalorder %s17, %s19
      %p26 = scmp.eq.s32.totalorder %s14, 2
      %p27 = por %p25, %p26
      %p28 = scmp.ne.s32.totalorder %s19, %s20
      %p29 = scmp.eq.s32.totalorder %s14, 0
      %p30 = por %p28, %p29
      %p31 = scmp.ne.s32.totalorder %s19, %s20
      %p32 = scmp.eq.s32.totalorder %s15, 2
      %p33 = por %p31, %p32
      %p35 = scmp.ne.s32.totalorder %s20, %s34
      %p36 = scmp.eq.s32.totalorder %s15, 0
      %p37 = por %p35, %p36
      %s38 = ssub.s32 %s9, %s16
      %p39 = scmp.eq.s32.totalorder %s38, 0
      %s41 = sadd.s32 %s40, 1
      %s42 = scalar_select %p39, %s40, %s41
      %p45 = pneg %p39
      %p46 = scmp.eq.s32.totalorder %s9, 2
      %p47 = por %p45, %p46
      %p48 = scmp.ne.s32.totalorder %s40, %s43
      %p49 = scmp.eq.s32.totalorder %s9, 0
      %p50 = por %p48, %p49
      %p51 = scmp.ne.s32.totalorder %s40, %s43
      %p52 = scmp.eq.s32.totalorder %s14, 2
      %p53 = por %p51, %p52
      %p54 = scmp.ne.s32.totalorder %s43, %s44
      %p55 = scmp.eq.s32.totalorder %s14, 0
      %p56 = por %p54, %p55
      %p57 = scmp.ne.s32.totalorder %s43, %s44
      %p58 = scmp.eq.s32.totalorder %s15, 2
      %p59 = por %p57, %p58
      %p61 = scmp.ne.s32.totalorder %s44, %s60
      %p62 = scmp.eq.s32.totalorder %s15, 0
      %p63 = por %p61, %p62
      %s65 = sadd.s32 %s64, 1
      %p68 = scmp.eq.s32.totalorder %s9, 2
      %p69 = scmp.ne.s32.totalorder %s64, %s66
      %p70 = scmp.eq.s32.totalorder %s9, 0
      %p71 = por %p69, %p70
      %p72 = scmp.ne.s32.totalorder %s64, %s66
      %p73 = scmp.eq.s32.totalorder %s14, 2
      %p74 = por %p72, %p73
      %p75 = scmp.ne.s32.totalorder %s66, %s67
      %p76 = scmp.eq.s32.totalorder %s14, 0
      %p77 = por %p75, %p76
      %p78 = scmp.ne.s32.totalorder %s66, %s67
      %p79 = scmp.eq.s32.totalorder %s15, 2
      %p80 = por %p78, %p79
      %p82 = scmp.ne.s32.totalorder %s67, %s81
      %p83 = scmp.eq.s32.totalorder %s15, 0
      %p84 = por %p82, %p83
      %s85 = ssub.s32 %s9, %s16
      %p86 = scmp.eq.s32.totalorder %s85, 0
      %s88 = sadd.s32 %s87, 1
      %s89 = scalar_select %p86, %s87, %s88
      %p92 = pneg %p86
      %p93 = scmp.eq.s32.totalorder %s9, 2
      %p94 = por %p92, %p93
      %p95 = scmp.ne.s32.totalorder %s87, %s90
      %p96 = scmp.eq.s32.totalorder %s9, 0
      %p97 = por %p95, %p96
      %p98 = scmp.ne.s32.totalorder %s87, %s90
      %p99 = scmp.eq.s32.totalorder %s14, 2
      %p100 = por %p98, %p99
      %p101 = scmp.ne.s32.totalorder %s90, %s91
      %p102 = scmp.eq.s32.totalorder %s14, 0
      %p103 = por %p101, %p102
      %p104 = scmp.ne.s32.totalorder %s90, %s91
      %p105 = scmp.eq.s32.totalorder %s15, 2
      %p106 = por %p104, %p105
      %p108 = scmp.ne.s32.totalorder %s91, %s107
      %p109 = scmp.eq.s32.totalorder %s15, 0
      %p110 = por %p108, %p109
      %p111 = scmp.le.s32.totalorder 1, %s9
      %p112 = scmp.lt.s32.totalorder %s9, 4
      %p113 = pnand %p111, %p112
      %p114 = pneg %p113
      // Predicated region
      $region9: #{net_forward.9} parent=5 // pred_check
        _
      $region10: #{net_forward.9} parent=5 // pred_check_branch
        %116 = sbr.rel (%p113) target = $region12
      $region11: #{net_forward.9} parent=5 // pred_region
        %s117 = ssub.s32 %s9, 1
        // Predicated region
        $region13: #{net_forward.9} parent=11 // pred_check
          %p118 = pneg %p30
        $region14: #{net_forward.9} parent=11 // pred_check_branch
          %120 = sbr.rel (%p118) target = $region16
        $region15: #{net_forward.9} parent=11 // pred_region
          _
        $region16: #{net_forward.9} parent=11 // pred_fallthru
          _
        // Predicated region
        $region17: #{net_forward.9} parent=11 // pred_check
          %p121 = pneg %p77
        $region18: #{net_forward.9} parent=11 // pred_check_branch
          %123 = sbr.rel (%p121) target = $region20
        $region19: #{net_forward.9} parent=11 // pred_region
          _
        $region20: #{net_forward.9} parent=11 // pred_fallthru
          _
      $region12: #{net_forward.9} parent=5 // pred_fallthru
        _
      %p124 = scmp.lt.s32.totalorder %s9, 3
      // Predicated region
      $region21: #{net_forward.9} parent=5 // pred_check
        %p125 = pneg %p124
      $region22: #{net_forward.9} parent=5 // pred_check_branch
        %127 = sbr.rel (%p125) target = $region24
      $region23: #{net_forward.9} parent=5 // pred_region
        // Predicated region
        $region25: #{net_forward.9} parent=23 // pred_check
          %p128 = pneg %p50
        $region26: #{net_forward.9} parent=23 // pred_check_branch
          %130 = sbr.rel (%p128) target = $region28
        $region27: #{net_forward.9} parent=23 // pred_region
          %s131 = sand.u32 %s40, 1
          %s132 = sand.u32 %s40, 1
          %s133 = smul.addr %s132, 48
          %s134 = scalar_lea.vmem [#allocation2], %s133
          %s135 = smul.u32 3, %s9
          %s136 = smul.addr %s135, 4
          %s137 = scalar_lea.vmem %s1, %s136
          // Predicated region
          $region29: #{net_forward.9} parent=27 // pred_check
            _
          $region30: #{net_forward.9} parent=27 // pred_check_branch
            %139 = sbr.rel (0) target = $region32
          $region31: #{net_forward.9} parent=27 // pred_region
            // Predicated region
            $region33: #{net_forward.9} parent=31 // pred_check
              _
            $region34: #{net_forward.9} parent=31 // pred_check_branch
              %141 = sbr.rel (0) target = $region36
            $region35: #{net_forward.9} parent=31 // pred_region
              %s142 = scalar_lea.vmem %s137, 8
              %s143 = scalar_lea.vmem %s134, 8 [#allocation2]
              loop: start=0, step=1, limit=1
              $region37: #{net_forward.9} parent=35 // loop_pre_header
                _
              $region38: #{net_forward.9} parent=35 // loop_header
                %s145 = sphi 0, %s149
                %p146 = scmp.ge.s32.totalorder %s145, 1
                %s150 = sphi %s137, %s137
                %s151 = sphi %s134, %s134
              $region39: #{net_forward.9} parent=35 // loop_header_branch
                %148 = sbr.rel (%p146) target = $region43
              $region40: #{net_forward.9} parent=35 // loop_body
                %v152 = vld [vmem:[%s150] sm:$0xff]
                %153 = vst [vmem:[%s151] sm:$0xff] %v152
                %v154 = vld [vmem:[%s150 + $0x24] sm:$0xff]
                %155 = vst [vmem:[%s151 + $0xc] sm:$0xff] %v154
                %v156 = vld [vmem:[%s150 + $0x48] sm:$0xff]
                %157 = vst [vmem:[%s151 + $0x18] sm:$0xff] %v156
                %v158 = vld [vmem:[%s150 + $0x6c] sm:$0xff]
                %159 = vst [vmem:[%s151 + $0x24] sm:$0xff] %v158
              $region41: #{net_forward.9} parent=35 // loop_footer
                %s149 = sadd.s32 1, %s145
              $region42: #{net_forward.9} parent=35 // loop_footer_branch
                %144 = sbr.rel target = $region38
              $region43: #{net_forward.9} parent=35 // loop_exit
                _
              %s161 = ssub.s32 16, 1
              loop: start=0, step=1, limit=1
              $region44: #{net_forward.9} parent=35 // loop_pre_header
                _
              $region45: #{net_forward.9} parent=35 // loop_header
                %s163 = sphi 0, %s167
                %p164 = scmp.ge.s32.totalorder %s163, 1
                %s168 = sphi %s142, %s142
                %s169 = sphi %s143, %s143
              $region46: #{net_forward.9} parent=35 // loop_header_branch
                %166 = sbr.rel (%p164) target = $region50
              $region47: #{net_forward.9} parent=35 // loop_body
                %v170 = vld [vmem:[%s168] sm:%s161]
                %171 = vst [vmem:[%s169] sm:%s161] %v170
                %v172 = vld [vmem:[%s168 + $0x24] sm:%s161]
                %173 = vst [vmem:[%s169 + $0xc] sm:%s161] %v172
                %v174 = vld [vmem:[%s168 + $0x48] sm:%s161]
                %175 = vst [vmem:[%s169 + $0x18] sm:%s161] %v174
                %v176 = vld [vmem:[%s168 + $0x6c] sm:%s161]
                %177 = vst [vmem:[%s169 + $0x24] sm:%s161] %v176
              $region48: #{net_forward.9} parent=35 // loop_footer
                %s167 = sadd.s32 1, %s163
              $region49: #{net_forward.9} parent=35 // loop_footer_branch
                %162 = sbr.rel target = $region45
              $region50: #{net_forward.9} parent=35 // loop_exit
                _
            $region36: #{net_forward.9} parent=31 // pred_fallthru
              _
          $region32: #{net_forward.9} parent=27 // pred_fallthru
            _
          %178 = vnop
        $region28: #{net_forward.9} parent=23 // pred_fallthru
          _
      $region24: #{net_forward.9} parent=5 // pred_fallthru
        _
      %p179 = scmp.le.s32.totalorder 1, %s9
      %p180 = scmp.lt.s32.totalorder %s9, 4
      %p181 = pnand %p179, %p180
      %p182 = pneg %p181
      // Predicated region
      $region51: #{net_forward.9} parent=5 // pred_check
        _
      $region52: #{net_forward.9} parent=5 // pred_check_branch
        %184 = sbr.rel (%p181) target = $region54
      $region53: #{net_forward.9} parent=5 // pred_region
        %s185 = ssub.s32 %s9, 1
        %s186 = sand.u32 %s43, 1
        %s187 = sand.u32 %s43, 1
        %s188 = smul.addr %s187, 48
        %s189 = scalar_lea.vmem [#allocation2], %s188
        // Predicated region
        $region55: #{net_forward.9} parent=53 // pred_check
          %p190 = pneg %p56
        $region56: #{net_forward.9} parent=53 // pred_check_branch
          %192 = sbr.rel (%p190) target = $region58
        $region57: #{net_forward.9} parent=53 // pred_region
          _
        $region58: #{net_forward.9} parent=53 // pred_fallthru
          _
        %p193 = pneg %p30
        %p194 = pneg %p27
        %s195 = sand.u32 %s43, 1
        %s196 = sand.u32 %s43, 1
        %s197 = smul.addr %s196, 48
        %s198 = scalar_lea.vmem [#allocation2], %s197
        %p199 = pneg %p56
        %p200 = pneg %p53
        %p201 = pneg %p77
        %p202 = pneg %p74
        %p203 = pneg %p103
        %p204 = pneg %p100
        %s205 = sand.u32 %s90, 1
        %s206 = sand.u32 %s90, 1
        %s207 = smul.addr %s206, 48
        %s208 = scalar_lea.vmem [#allocation3], %s207
        %s209 = smul.u32 3, %s14
        %s210 = smul.u32 3, %s14
        %v212 = vld [vmem:[%s0] sm:$0xf]
        %v213 = vld [vmem:[%s0 + $0x4] sm:$0x1]
        %v214 = vld [vmem:[%s189] sm:$0xff]
        %v215 = vld [vmem:[%s189 + $0x8] sm:$0xf]
        %v216 = vld [vmem:[%s189 + $0xc] sm:$0xff]
        %v217 = vld [vmem:[%s189 + $0x14] sm:$0xf]
        %v218 = vld [vmem:[%s189 + $0x18] sm:$0xff]
        %v219 = vld [vmem:[%s189 + $0x20] sm:$0xf]
        %v220 = vld [vmem:[%s189 + $0x24] sm:$0x11]
        %v221 = vld [vmem:[%s189 + $0x2c] sm:$0x1]
        %v222 = vld [vmem:[%s2] sm:$0xff]
        %v223 = vld [vmem:[%s2 + $0x8] sm:$0x3]
        %225 = vset.pattern.permute.xlu0 0
        %226 = vperm.xlu0 %225, %v222
        %v227 = vpop.permute.xlu0 %226
        %230 = vset.pattern.permute.xlu0 0
        %231 = vperm.xlu0 %230, %v223
        %v232 = vpop.permute.xlu0 %231
        %v236 = vunpack.c.l.b16 %v212
        %v237 = vunpack.c.l.b16 %v213
        %v238 = vpack.c.b16 %v237, %v236
        %v247 = vunpack.c.l.b16 %v214
        %v248 = vunpack.c.h.b16 %v214
        %v249 = vunpack.c.l.b16 %v215
        %v250 = vunpack.c.l.b16 %v216
        %v251 = vunpack.c.h.b16 %v216
        %v252 = vunpack.c.l.b16 %v217
        %v253 = vunpack.c.l.b16 %v218
        %v254 = vunpack.c.h.b16 %v218
        %v255 = vunpack.c.l.b16 %v219
        %v256 = vunpack.c.l.b16 %v220
        %v257 = vunpack.c.h.b16 %v220
        %v258 = vunpack.c.l.b16 %v221
        %v259 = vpack.c.b16 %v250, %v247
        %v260 = vpack.c.b16 %v251, %v248
        %v261 = vpack.c.b16 %v252, %v249
        %v262 = vpack.c.b16 %v256, %v253
        %v263 = vpack.c.b16 %v257, %v254
        %v264 = vpack.c.b16 %v258, %v255
        %vm268 = vcmask 203776
        %v270 = vsel %vm268, %v238, 0
        %vm272 = vcmask 1043456
        %vm273 = vcmask 1044480
        %v274 = vsel %vm272, 4294967295, 65535
        %v275 = vsel %vm273, %v274, 0
        %v277 = vand.u32 %v262, %v275
        %v280 = vand.u32 %v263, %v275
        %v283 = vand.u32 %v264, %v275
        %285 = vmatpush.bf16.msra.mxu0 0
        %286 = vmatpush.bf16.msra.mxu0 0
        %287 = vmatpush.bf16.msra.mxu0 0
        %288 = vmatpush.bf16.msra.mxu0 0
        %289 = vmatpush.bf16.msra.mxu0 0
        %290 = vmatpush.bf16.msra.mxu0 0
        %291 = vmatpush.bf16.msra.mxu0 %v277
        %292 = vmatpush.bf16.msra.mxu0 %v259
        %293 = vmatmul.bf16.gmra.mxu0 %v270
        %v294 = vpop.f32.mrf.mxu0
        %v295 = vadd.f32 %v227, %v294
        %v296 = vpop.f32.mrf.mxu0
        %v297 = vadd.f32 %v232, %v296
        %298 = vdwg.mxu0
        %299 = vmatpush.bf16.msra.mxu0 0
        %300 = vmatpush.bf16.msra.mxu0 0
        %301 = vmatpush.bf16.msra.mxu0 0
        %302 = vmatpush.bf16.msra.mxu0 0
        %303 = vmatpush.bf16.msra.mxu0 0
        %304 = vmatpush.bf16.msra.mxu0 0
        %305 = vmatpush.bf16.msra.mxu0 %v280
        %306 = vmatpush.bf16.msra.mxu0 %v260
        %307 = vmatmul.bf16.gmra.mxu0 %v270
        %v308 = vpop.f32.mrf.mxu0
        %v309 = vadd.f32 %v227, %v308
        %v310 = vpop.f32.mrf.mxu0
        %v311 = vadd.f32 %v232, %v310
        %312 = vdwg.mxu0
        %313 = vmatpush.bf16.msra.mxu0 0
        %314 = vmatpush.bf16.msra.mxu0 0
        %315 = vmatpush.bf16.msra.mxu0 0
        %316 = vmatpush.bf16.msra.mxu0 0
        %317 = vmatpush.bf16.msra.mxu0 0
        %318 = vmatpush.bf16.msra.mxu0 0
        %319 = vmatpush.bf16.msra.mxu0 %v283
        %320 = vmatpush.bf16.msra.mxu0 %v261
        %321 = vmatmul.bf16.gmra.mxu0 %v270
        %v322 = vpop.f32.mrf.mxu0
        %v323 = vadd.f32 %v227, %v322
        %v324 = vpop.f32.mrf.mxu0
        %v325 = vadd.f32 %v232, %v324
        %326 = vdwg.mxu0
        %v327 = vmax.f32 %v295, 0.0
        %v328 = vmax.f32 %v309, 0.0
        %v329 = vmax.f32 %v323, 0.0
        %v330 = vmax.f32 %v297, 0.0
        %v331 = vmax.f32 %v311, 0.0
        %v332 = vmax.f32 %v325, 0.0
        %333 = vst [vmem:[%s208] sm:$0xff] %v327
        %334 = vst [vmem:[%s208 + $0x8] sm:$0xff] %v328
        %335 = vst [vmem:[%s208 + $0x10] sm:$0xff] %v329
        %336 = vst [vmem:[%s208 + $0x18] sm:$0x3] %v330
        %337 = vst [vmem:[%s208 + $0x20] sm:$0x3] %v331
        %338 = vst [vmem:[%s208 + $0x28] sm:$0x3] %v332
        %s339 = sand.u32 %s90, 1
        %s340 = sand.u32 %s90, 1
        %s341 = smul.addr %s340, 48
        %s342 = scalar_lea.vmem [#allocation3], %s341
        // Predicated region
        $region59: #{net_forward.9} parent=53 // pred_check
          %p343 = pneg %p100
        $region60: #{net_forward.9} parent=53 // pred_check_branch
          %345 = sbr.rel (%p343) target = $region62
        $region61: #{net_forward.9} parent=53 // pred_region
          %s346 = smul.u32 3, %s14
          %s347 = smul.addr %s346, 8
          %s348 = scalar_lea.vmem %s3, %s347
          // Predicated region
          $region63: #{net_forward.9} parent=61 // pred_check
            _
          $region64: #{net_forward.9} parent=61 // pred_check_branch
            %350 = sbr.rel (0) target = $region66
          $region65: #{net_forward.9} parent=61 // pred_region
            // Predicated region
            $region67: #{net_forward.9} parent=65 // pred_check
              _
            $region68: #{net_forward.9} parent=65 // pred_check_branch
              %352 = sbr.rel (0) target = $region70
            $region69: #{net_forward.9} parent=65 // pred_region
              loop: start=0, step=1, limit=1
              $region71: #{net_forward.9} parent=69 // loop_pre_header
                _
              $region72: #{net_forward.9} parent=69 // loop_header
                %s354 = sphi 0, %s358
                %p355 = scmp.ge.s32.totalorder %s354, 1
                %s359 = sphi %s342, %s342
                %s360 = sphi %s348, %s348
              $region73: #{net_forward.9} parent=69 // loop_header_branch
                %357 = sbr.rel (%p355) target = $region77
              $region74: #{net_forward.9} parent=69 // loop_body
                %v361 = vld [vmem:[%s359] sm:$0xff]
                %362 = vst [vmem:[%s360] sm:$0xff] %v361
                %v363 = vld [vmem:[%s359 + $0x8] sm:$0xff]
                %364 = vst [vmem:[%s360 + $0x8] sm:$0xff] %v363
                %v365 = vld [vmem:[%s359 + $0x10] sm:$0xff]
                %366 = vst [vmem:[%s360 + $0x10] sm:$0xff] %v365
                %v367 = vld [vmem:[%s359 + $0x18] sm:$0xff]
                %368 = vst [vmem:[%s360 + $0x48] sm:$0xff] %v367
                %v369 = vld [vmem:[%s359 + $0x20] sm:$0xff]
                %370 = vst [vmem:[%s360 + $0x50] sm:$0xff] %v369
                %v371 = vld [vmem:[%s359 + $0x28] sm:$0xff]
                %372 = vst [vmem:[%s360 + $0x58] sm:$0xff] %v371
              $region75: #{net_forward.9} parent=69 // loop_footer
                %s358 = sadd.s32 1, %s354
              $region76: #{net_forward.9} parent=69 // loop_footer_branch
                %353 = sbr.rel target = $region72
              $region77: #{net_forward.9} parent=69 // loop_exit
                _
            $region70: #{net_forward.9} parent=65 // pred_fallthru
              _
            // Predicated region
            $region78: #{net_forward.9} parent=65 // pred_check
              _
            $region79: #{net_forward.9} parent=65 // pred_check_branch
              %374 = sbr.rel target = $region81
            $region80: #{net_forward.9} parent=65 // pred_region
              _
            $region81: #{net_forward.9} parent=65 // pred_fallthru
              _
          $region66: #{net_forward.9} parent=61 // pred_fallthru
            _
          %375 = vnop
        $region62: #{net_forward.9} parent=53 // pred_fallthru
          _
      $region54: #{net_forward.9} parent=5 // pred_fallthru
        _
      %p376 = scmp.le.s32.totalorder 2, %s9
      // Predicated region
      $region82: #{net_forward.9} parent=5 // pred_check
        %p377 = pneg %p376
      $region83: #{net_forward.9} parent=5 // pred_check_branch
        %379 = sbr.rel (%p377) target = $region85
      $region84: #{net_forward.9} parent=5 // pred_region
        %s380 = ssub.s32 %s9, 2
        // Predicated region
        $region86: #{net_forward.9} parent=84 // pred_check
          %p381 = pneg %p106
        $region87: #{net_forward.9} parent=84 // pred_check_branch
          %383 = sbr.rel (%p381) target = $region89
        $region88: #{net_forward.9} parent=84 // pred_region
          %s384 = sand.u32 %s91, 1
          %s385 = sand.u32 %s91, 1
          %s386 = smul.addr %s385, 48
          %s387 = scalar_lea.vmem [#allocation3], %s386
        $region89: #{net_forward.9} parent=84 // pred_fallthru
          _
      $region85: #{net_forward.9} parent=5 // pred_fallthru
        _
    $region6: #{net_forward.9} parent=1 // loop_footer
      %s13 = sadd.s32 1, %s9
    $region7: #{net_forward.9} parent=1 // loop_footer_branch
      %8 = sbr.rel target = $region3
    $region8: #{net_forward.9} parent=1 // loop_exit
      _

// kernel: net_forward.10
$region0: #{net_forward.10}
  #allocation0 [shape = 'u32[]', space=smem, size = 0x4, offset = 0x4, fixed_abs, tag = 'smem constant byte address 0x4 - core index']
  #allocation1 [shape = 'u32[72,128]{1,0:T(1,128)}', space=vmem, size = 0x9000, scoped, tag = 'internal scratch']
  %s0 = inlined_call_operand.vmem [shape: bf16[20,250], index: 0, kind: input, shape index: {}]
  %s1 = inlined_call_operand.vmem [shape: bf16[250,128], index: 1, kind: input, shape index: {}]
  %s2 = inlined_call_operand.vmem [shape: f32[20,1], index: 2, kind: input, shape index: {}]
  %s3 = inlined_call_operand.vmem [shape: f32[20,128], index: 3, kind: output, shape index: {}]
  %s4 = sld [smem:[#allocation0]]
  $region22: #{net_forward.10} parent=0
    _
  %s6 = ssub.s32 1, %s4
  %s7 = scalar_select 0, %s6, %s4
  // Predicated region
  $region2: #{net_forward.10} parent=0 // pred_check
    _
  $region3: #{net_forward.10} parent=0 // pred_check_branch
    %9 = sbr.rel (0) target = $region5
  $region4: #{net_forward.10} parent=0 // pred_region
    _
  $region5: #{net_forward.10} parent=0 // pred_fallthru
    _
  // Predicated region
  $region6: #{net_forward.10} parent=0 // pred_check
    _
  $region7: #{net_forward.10} parent=0 // pred_check_branch
    %11 = sbr.rel (0) target = $region9
  $region8: #{net_forward.10} parent=0 // pred_region
    _
  $region9: #{net_forward.10} parent=0 // pred_fallthru
    _
  // Predicated region
  $region10: #{net_forward.10} parent=0 // pred_check
    _
  $region11: #{net_forward.10} parent=0 // pred_check_branch
    %13 = sbr.rel (0) target = $region13
  $region12: #{net_forward.10} parent=0 // pred_region
    _
  $region13: #{net_forward.10} parent=0 // pred_fallthru
    _
  %v14 = vld [vmem:[%s0] sm:$0xff]
  %v15 = vld [vmem:[%s0 + $0x8] sm:$0xff]
  %v16 = vld [vmem:[%s0 + $0x10] sm:$0x33]
  %v17 = vld [vmem:[%s1] sm:$0xf]
  %v18 = vld [vmem:[%s1 + $0x4] sm:$0xf]
  %v19 = vld [vmem:[%s1 + $0x8] sm:$0xf]
  %v20 = vld [vmem:[%s1 + $0xc] sm:$0xf]
  %v21 = vld [vmem:[%s1 + $0x10] sm:$0xf]
  %v22 = vld [vmem:[%s1 + $0x14] sm:$0xf]
  %v23 = vld [vmem:[%s1 + $0x18] sm:$0xf]
  %v24 = vld [vmem:[%s1 + $0x1c] sm:$0xf]
  %v25 = vld [vmem:[%s1 + $0x20] sm:$0xf]
  %v26 = vld [vmem:[%s1 + $0x24] sm:$0xf]
  %v27 = vld [vmem:[%s1 + $0x28] sm:$0xf]
  %v28 = vld [vmem:[%s1 + $0x2c] sm:$0xf]
  %v29 = vld [vmem:[%s1 + $0x30] sm:$0xf]
  %v30 = vld [vmem:[%s1 + $0x34] sm:$0xf]
  %v31 = vld [vmem:[%s1 + $0x38] sm:$0xf]
  %v32 = vld [vmem:[%s1 + $0x3c] sm:$0xf]
  %v33 = vld [vmem:[%s1 + $0x40] sm:$0xf]
  %v34 = vld [vmem:[%s1 + $0x44] sm:$0xf]
  %v35 = vld [vmem:[%s1 + $0x48] sm:$0xf]
  %v36 = vld [vmem:[%s1 + $0x4c] sm:$0xf]
  %v37 = vld [vmem:[%s1 + $0x50] sm:$0xf]
  %v38 = vld [vmem:[%s1 + $0x54] sm:$0xf]
  %v39 = vld [vmem:[%s1 + $0x58] sm:$0xf]
  %v40 = vld [vmem:[%s1 + $0x5c] sm:$0xf]
  %v41 = vld [vmem:[%s1 + $0x60] sm:$0xf]
  %v42 = vld [vmem:[%s1 + $0x64] sm:$0xf]
  %v43 = vld [vmem:[%s1 + $0x68] sm:$0xf]
  %v44 = vld [vmem:[%s1 + $0x6c] sm:$0xf]
  %v45 = vld [vmem:[%s1 + $0x70] sm:$0xf]
  %v46 = vld [vmem:[%s1 + $0x74] sm:$0xf]
  %v47 = vld [vmem:[%s1 + $0x78] sm:$0xf]
  %v48 = vld [vmem:[%s1 + $0x7c] sm:$0x1]
  %v49 = vld [vmem:[%s2] sm:$0xff]
  %v50 = vld [vmem:[%s2 + $0x8] sm:$0xff]
  %v51 = vld [vmem:[%s2 + $0x10] sm:$0xf]
  %53 = vset.pattern.permute.xlu0 0
  %54 = vperm.xlu0 %53, %v49
  %v55 = vpop.permute.xlu0 %54
  %58 = vset.pattern.permute.xlu0 0
  %59 = vperm.xlu0 %58, %v50
  %v60 = vpop.permute.xlu0 %59
  %63 = vset.pattern.permute.xlu0 0
  %64 = vperm.xlu0 %63, %v51
  %v65 = vpop.permute.xlu0 %64
  %v70 = vunpack.c.l.b16 %v14
  %v71 = vunpack.c.h.b16 %v14
  %v72 = vunpack.c.l.b16 %v15
  %v73 = vunpack.c.h.b16 %v15
  %v74 = vunpack.c.l.b16 %v16
  %v75 = vunpack.c.h.b16 %v16
  %v76 = vpack.c.b16 %v72, %v70
  %v77 = vpack.c.b16 %v73, %v71
  %v78 = vpack.c.b16 %v74, %v74
  %v79 = vpack.c.b16 %v75, %v75
  %v114 = vunpack.c.l.b16 %v17
  %v115 = vunpack.c.l.b16 %v18
  %v116 = vunpack.c.l.b16 %v19
  %v117 = vunpack.c.l.b16 %v20
  %v118 = vunpack.c.l.b16 %v21
  %v119 = vunpack.c.l.b16 %v22
  %v120 = vunpack.c.l.b16 %v23
  %v121 = vunpack.c.l.b16 %v24
  %v122 = vunpack.c.l.b16 %v25
  %v123 = vunpack.c.l.b16 %v26
  %v124 = vunpack.c.l.b16 %v27
  %v125 = vunpack.c.l.b16 %v28
  %v126 = vunpack.c.l.b16 %v29
  %v127 = vunpack.c.l.b16 %v30
  %v128 = vunpack.c.l.b16 %v31
  %v129 = vunpack.c.l.b16 %v32
  %v130 = vunpack.c.l.b16 %v33
  %v131 = vunpack.c.l.b16 %v34
  %v132 = vunpack.c.l.b16 %v35
  %v133 = vunpack.c.l.b16 %v36
  %v134 = vunpack.c.l.b16 %v37
  %v135 = vunpack.c.l.b16 %v38
  %v136 = vunpack.c.l.b16 %v39
  %v137 = vunpack.c.l.b16 %v40
  %v138 = vunpack.c.l.b16 %v41
  %v139 = vunpack.c.l.b16 %v42
  %v140 = vunpack.c.l.b16 %v43
  %v141 = vunpack.c.l.b16 %v44
  %v142 = vunpack.c.l.b16 %v45
  %v143 = vunpack.c.l.b16 %v46
  %v144 = vunpack.c.l.b16 %v47
  %v145 = vunpack.c.l.b16 %v48
  %v146 = vpack.c.b16 %v115, %v114
  %v147 = vpack.c.b16 %v117, %v116
  %v148 = vpack.c.b16 %v119, %v118
  %v149 = vpack.c.b16 %v121, %v120
  %v150 = vpack.c.b16 %v123, %v122
  %v151 = vpack.c.b16 %v125, %v124
  %v152 = vpack.c.b16 %v127, %v126
  %v153 = vpack.c.b16 %v129, %v128
  %v154 = vpack.c.b16 %v131, %v130
  %v155 = vpack.c.b16 %v133, %v132
  %v156 = vpack.c.b16 %v135, %v134
  %v157 = vpack.c.b16 %v137, %v136
  %v158 = vpack.c.b16 %v139, %v138
  %v159 = vpack.c.b16 %v141, %v140
  %v160 = vpack.c.b16 %v143, %v142
  %v161 = vpack.c.b16 %v145, %v144
  %vm177 = vcmask 998400
  %v179 = vsel %vm177, %v77, 0
  %v182 = vsel %vm177, %v79, 0
  %vm184 = vcmask 1044480
  %v186 = vsel %vm184, %v161, 0
  %188 = vmatpush.bf16.msra.mxu0 %v153
  %189 = vmatpush.bf16.msra.mxu0 %v152
  %190 = vmatpush.bf16.msra.mxu0 %v151
  %191 = vmatpush.bf16.msra.mxu0 %v150
  %192 = vmatpush.bf16.msra.mxu0 %v149
  %193 = vmatpush.bf16.msra.mxu0 %v148
  %194 = vmatpush.bf16.msra.mxu0 %v147
  %195 = vmatpush.bf16.msra.mxu0 %v146
  %196 = vmatmul.bf16.gmra.mxu0 %v76
  %v197 = vpop.f32.mrf.mxu0
  %v198 = vadd.f32 %v55, %v197
  %v199 = vpop.f32.mrf.mxu0
  %v200 = vadd.f32 %v60, %v199
  %201 = vmatmul.bf16.gmra.mxu0 %v78
  %v202 = vpop.f32.mrf.mxu0
  %v203 = vadd.f32 %v65, %v202
  %v204 = vpop.f32.mrf.mxu0
  %205 = vdwg.mxu0
  %206 = vmatpush.bf16.msra.mxu0 %v186
  %207 = vmatpush.bf16.msra.mxu0 %v160
  %208 = vmatpush.bf16.msra.mxu0 %v159
  %209 = vmatpush.bf16.msra.mxu0 %v158
  %210 = vmatpush.bf16.msra.mxu0 %v157
  %211 = vmatpush.bf16.msra.mxu0 %v156
  %212 = vmatpush.bf16.msra.mxu0 %v155
  %213 = vmatpush.bf16.msra.mxu0 %v154
  %214 = vmatmul.bf16.gmra.mxu0 %v179
  %v215 = vpop.f32.mrf.mxu0
  %v216 = vadd.f32 %v198, %v215
  %v217 = vpop.f32.mrf.mxu0
  %v218 = vadd.f32 %v200, %v217
  %219 = vmatmul.bf16.gmra.mxu0 %v182
  %v220 = vpop.f32.mrf.mxu0
  %v221 = vadd.f32 %v203, %v220
  %v222 = vpop.f32.mrf.mxu0
  %223 = vdwg.mxu0
  %v224 = vmax.f32 %v216, 0.0
  %v225 = vmax.f32 %v218, 0.0
  %v226 = vmax.f32 %v221, 0.0
  %227 = vst [vmem:[%s3] sm:$0xff] %v224
  %228 = vst [vmem:[%s3 + $0x8] sm:$0xff] %v225
  %229 = vst [vmem:[%s3 + $0x10] sm:$0xf] %v226
  // Predicated region
  $region14: #{net_forward.10} parent=0 // pred_check
    _
  $region15: #{net_forward.10} parent=0 // pred_check_branch
    %231 = sbr.rel (0) target = $region17
  $region16: #{net_forward.10} parent=0 // pred_region
    _
  $region17: #{net_forward.10} parent=0 // pred_fallthru
    _
  // Predicated region
  $region18: #{net_forward.10} parent=0 // pred_check
    _
  $region19: #{net_forward.10} parent=0 // pred_check_branch
    %233 = sbr.rel (0) target = $region21
  $region20: #{net_forward.10} parent=0 // pred_region
    _
  $region21: #{net_forward.10} parent=0 // pred_fallthru
    _

// kernel: net_forward.11
$region0: #{net_forward.11}
  #allocation0 [shape = 'u32[]', space=smem, size = 0x4, offset = 0x4, fixed_abs, tag = 'smem constant byte address 0x4 - core index']
  #allocation1 [shape = 'u32[72,128]{1,0:T(1,128)}', space=vmem, size = 0x9000, scoped, tag = 'internal scratch']
  %s0 = inlined_call_operand.vmem [shape: f32[2,320], index: 0, kind: input, shape index: {}]
  %s1 = inlined_call_operand.vmem [shape: f32[320,50], index: 1, kind: input, shape index: {}]
  %s2 = inlined_call_operand.vmem [shape: f32[1,50], index: 2, kind: input, shape index: {}]
  %s3 = inlined_call_operand.vmem [shape: f32[50,10], index: 3, kind: input, shape index: {}]
  %s4 = inlined_call_operand.vmem [shape: f32[1,10], index: 4, kind: input, shape index: {}]
  %s5 = inlined_call_operand.hbm [shape: f32[2,10], index: 5, kind: output, shape index: {}]
  %s6 = sld [smem:[#allocation0]]
  $region30: #{net_forward.11} parent=0
    _
  %s8 = ssub.s32 1, %s6
  %s9 = scalar_select 0, %s8, %s6
  $region1: #{net_forward.11} parent=0
    #allocation2 [shape = 'u8[1024]{0}', space=vmem, size = 0x400, scoped, tag = 'output window, operand 0, single buffered']
    #allocation3 [shape = 's32[1]{0}', space=sflag, size = 0x4, scoped, tag = 'scoped memory for net_forward.11']
    %10 = vsyncpa [#allocation3], 0
    // Predicated region
    $region2: #{net_forward.11} parent=1 // pred_check
      _
    $region3: #{net_forward.11} parent=1 // pred_check_branch
      %12 = sbr.rel (0) target = $region5
    $region4: #{net_forward.11} parent=1 // pred_region
      _
    $region5: #{net_forward.11} parent=1 // pred_fallthru
      _
    // Predicated region
    $region6: #{net_forward.11} parent=1 // pred_check
      _
    $region7: #{net_forward.11} parent=1 // pred_check_branch
      %14 = sbr.rel (0) target = $region9
    $region8: #{net_forward.11} parent=1 // pred_region
      _
    $region9: #{net_forward.11} parent=1 // pred_fallthru
      _
    // Predicated region
    $region10: #{net_forward.11} parent=1 // pred_check
      _
    $region11: #{net_forward.11} parent=1 // pred_check_branch
      %16 = sbr.rel (0) target = $region13
    $region12: #{net_forward.11} parent=1 // pred_region
      _
    $region13: #{net_forward.11} parent=1 // pred_fallthru
      _
    // Predicated region
    $region14: #{net_forward.11} parent=1 // pred_check
      _
    $region15: #{net_forward.11} parent=1 // pred_check_branch
      %18 = sbr.rel (0) target = $region17
    $region16: #{net_forward.11} parent=1 // pred_region
      _
    $region17: #{net_forward.11} parent=1 // pred_fallthru
      _
    // Predicated region
    $region18: #{net_forward.11} parent=1 // pred_check
      _
    $region19: #{net_forward.11} parent=1 // pred_check_branch
      %20 = sbr.rel (0) target = $region21
    $region20: #{net_forward.11} parent=1 // pred_region
      _
    $region21: #{net_forward.11} parent=1 // pred_fallthru
      _
    %v21 = vld [vmem:[%s0] sm:$0x3f]
    %v22 = vld [vmem:[%s1] sm:$0xff]
    %v23 = vld [vmem:[%s1 + $0x8] sm:$0xff]
    %v24 = vld [vmem:[%s1 + $0x10] sm:$0xff]
    %v25 = vld [vmem:[%s1 + $0x18] sm:$0xff]
    %v26 = vld [vmem:[%s1 + $0x20] sm:$0xff]
    %v27 = vld [vmem:[%s1 + $0x28] sm:$0xff]
    %v28 = vld [vmem:[%s1 + $0x30] sm:$0xff]
    %v29 = vld [vmem:[%s1 + $0x38] sm:$0xff]
    %v30 = vld [vmem:[%s1 + $0x40] sm:$0xff]
    %v31 = vld [vmem:[%s1 + $0x48] sm:$0xff]
    %v32 = vld [vmem:[%s1 + $0x50] sm:$0xff]
    %v33 = vld [vmem:[%s1 + $0x58] sm:$0xff]
    %v34 = vld [vmem:[%s1 + $0x60] sm:$0xff]
    %v35 = vld [vmem:[%s1 + $0x68] sm:$0xff]
    %v36 = vld [vmem:[%s1 + $0x70] sm:$0xff]
    %v37 = vld [vmem:[%s1 + $0x78] sm:$0xff]
    %v38 = vld [vmem:[%s1 + $0x80] sm:$0xff]
    %v39 = vld [vmem:[%s1 + $0x88] sm:$0xff]
    %v40 = vld [vmem:[%s1 + $0x90] sm:$0xff]
    %v41 = vld [vmem:[%s1 + $0x98] sm:$0xff]
    %v42 = vld [vmem:[%s1 + $0xa0] sm:$0xff]
    %v43 = vld [vmem:[%s1 + $0xa8] sm:$0xff]
    %v44 = vld [vmem:[%s1 + $0xb0] sm:$0xff]
    %v45 = vld [vmem:[%s1 + $0xb8] sm:$0xff]
    %v46 = vld [vmem:[%s1 + $0xc0] sm:$0xff]
    %v47 = vld [vmem:[%s1 + $0xc8] sm:$0xff]
    %v48 = vld [vmem:[%s1 + $0xd0] sm:$0xff]
    %v49 = vld [vmem:[%s1 + $0xd8] sm:$0xff]
    %v50 = vld [vmem:[%s1 + $0xe0] sm:$0xff]
    %v51 = vld [vmem:[%s1 + $0xe8] sm:$0xff]
    %v52 = vld [vmem:[%s1 + $0xf0] sm:$0xff]
    %v53 = vld [vmem:[%s1 + $0xf8] sm:$0xff]
    %v54 = vld [vmem:[%s1 + $0x100] sm:$0xff]
    %v55 = vld [vmem:[%s1 + $0x108] sm:$0xff]
    %v56 = vld [vmem:[%s1 + $0x110] sm:$0xff]
    %v57 = vld [vmem:[%s1 + $0x118] sm:$0xff]
    %v58 = vld [vmem:[%s1 + $0x120] sm:$0xff]
    %v59 = vld [vmem:[%s1 + $0x128] sm:$0xff]
    %v60 = vld [vmem:[%s1 + $0x130] sm:$0xff]
    %v61 = vld [vmem:[%s1 + $0x138] sm:$0xff]
    %v62 = vld [vmem:[%s2] sm:$0x1]
    %v64 = vperm.slane %v62, 0
    %67 = vst [vmem:[#allocation1] ss:$4 sm:$0xff] %v21
    %v68 = vld.sshfl [vmem:[#allocation1] sm:$0xff pattern:$0x73625140]
    %v69 = vld.sshfl [vmem:[#allocation1 + $0x8] sm:$0xff pattern:$0x73625140]
    %v70 = vld.sshfl [vmem:[#allocation1 + $0x10] sm:$0xff pattern:$0x73625140]
    %vm73 = vcmask 523264
    %v74 = vsel %vm73, %v70, 0
    %76 = vmatpush.msra.mxu0 %v37
    %77 = vmatpush.msra.mxu0 %v36
    %78 = vmatpush.msra.mxu0 %v35
    %79 = vmatpush.msra.mxu0 %v34
    %80 = vmatpush.msra.mxu0 %v33
    %81 = vmatpush.msra.mxu0 %v32
    %82 = vmatpush.msra.mxu0 %v31
    %83 = vmatpush.msra.mxu0 %v30
    %84 = vmatpush.msra.mxu0 %v29
    %85 = vmatpush.msra.mxu0 %v28
    %86 = vmatpush.msra.mxu0 %v27
    %87 = vmatpush.msra.mxu0 %v26
    %88 = vmatpush.msra.mxu0 %v25
    %89 = vmatpush.msra.mxu0 %v24
    %90 = vmatpush.msra.mxu0 %v23
    %91 = vmatpush.msra.mxu0 %v22
    %92 = vmatmul.f32.gmra.mxu0 %v68
    %v93 = vpop.f32.mrf.mxu0
    %v94 = vadd.f32 %v64, %v93
    %95 = vdwg.mxu0
    %96 = vmatpush.msra.mxu0 %v53
    %97 = vmatpush.msra.mxu0 %v52
    %98 = vmatpush.msra.mxu0 %v51
    %99 = vmatpush.msra.mxu0 %v50
    %100 = vmatpush.msra.mxu0 %v49
    %101 = vmatpush.msra.mxu0 %v48
    %102 = vmatpush.msra.mxu0 %v47
    %103 = vmatpush.msra.mxu0 %v46
    %104 = vmatpush.msra.mxu0 %v45
    %105 = vmatpush.msra.mxu0 %v44
    %106 = vmatpush.msra.mxu0 %v43
    %107 = vmatpush.msra.mxu0 %v42
    %108 = vmatpush.msra.mxu0 %v41
    %109 = vmatpush.msra.mxu0 %v40
    %110 = vmatpush.msra.mxu0 %v39
    %111 = vmatpush.msra.mxu0 %v38
    %112 = vmatmul.f32.gmra.mxu0 %v69
    %v113 = vpop.f32.mrf.mxu0
    %v114 = vadd.f32 %v94, %v113
    %115 = vdwg.mxu0
    %116 = vmatpush.msra.mxu0 0.0
    %117 = vmatpush.msra.mxu0 0.0
    %118 = vmatpush.msra.mxu0 0.0
    %119 = vmatpush.msra.mxu0 0.0
    %120 = vmatpush.msra.mxu0 0.0
    %121 = vmatpush.msra.mxu0 0.0
    %122 = vmatpush.msra.mxu0 0.0
    %123 = vmatpush.msra.mxu0 0.0
    %124 = vmatpush.msra.mxu0 %v61
    %125 = vmatpush.msra.mxu0 %v60
    %126 = vmatpush.msra.mxu0 %v59
    %127 = vmatpush.msra.mxu0 %v58
    %128 = vmatpush.msra.mxu0 %v57
    %129 = vmatpush.msra.mxu0 %v56
    %130 = vmatpush.msra.mxu0 %v55
    %131 = vmatpush.msra.mxu0 %v54
    %132 = vmatmul.f32.gmra.mxu0 %v74
    %v133 = vpop.f32.mrf.mxu0
    %v134 = vadd.f32 %v114, %v133
    %135 = vdwg.mxu0
    %v136 = vmax.f32 %v134, 0.0
    %v137 = vld [vmem:[%s3] sm:$0xff]
    %v138 = vld [vmem:[%s3 + $0x8] sm:$0xff]
    %v139 = vld [vmem:[%s3 + $0x10] sm:$0xff]
    %v140 = vld [vmem:[%s3 + $0x18] sm:$0xff]
    %v141 = vld [vmem:[%s3 + $0x20] sm:$0xff]
    %v142 = vld [vmem:[%s3 + $0x28] sm:$0xff]
    %v143 = vld [vmem:[%s3 + $0x30] sm:$0x3]
    %v144 = vld [vmem:[%s4] sm:$0x1]
    %v146 = vperm.slane %v144, 0
    %vm148 = vcmask 408576
    %v150 = vsel %vm148, %v136, 0
    %vm152 = vcmask 1041408
    %v154 = vsel %vm152, %v143, 0
    %156 = vmatpush.msra.mxu0 0.0
    %157 = vmatpush.msra.mxu0 0.0
    %158 = vmatpush.msra.mxu0 0.0
    %159 = vmatpush.msra.mxu0 0.0
    %160 = vmatpush.msra.mxu0 0.0
    %161 = vmatpush.msra.mxu0 0.0
    %162 = vmatpush.msra.mxu0 0.0
    %163 = vmatpush.msra.mxu0 0.0
    %164 = vmatpush.msra.mxu0 0.0
    %165 = vmatpush.msra.mxu0 %v154
    %166 = vmatpush.msra.mxu0 %v142
    %167 = vmatpush.msra.mxu0 %v141
    %168 = vmatpush.msra.mxu0 %v140
    %169 = vmatpush.msra.mxu0 %v139
    %170 = vmatpush.msra.mxu0 %v138
    %171 = vmatpush.msra.mxu0 %v137
    %172 = vmatmul.f32.gmra.mxu0 %v150
    %v173 = vpop.f32.mrf.mxu0
    %v174 = vadd.f32 %v146, %v173
    %175 = vdwg.mxu0
    %vm176 = vcmask 74752
    %v177 = vsel %vm176, %v174, -inf
    %178 = vmax.xlane.f32.xlu0 %v177
    %v179 = vpop.xlane.xlu0 %178
    %v180 = vsub.f32 %v174, %v179
    %v181 = vmul.f32 %v180, 1.442695
    %v182 = vpow.pop %v181
    %v183 = vsel %vm176, %v182, 0.0
    %184 = vadd.xlane.f32.xlu0 %v183
    %v185 = vpop.xlane.xlu0 %184
    %v186 = vlog2.pop %v185
    %v187 = vmul.f32 %v186, 0.6931472
    %v188 = vsub.f32 %v180, %v187
    %189 = vst.msk [vmem:[#allocation2] sm:$0x3] %vm176, %v188
    // Predicated region
    $region22: #{net_forward.11} parent=1 // pred_check
      _
    $region23: #{net_forward.11} parent=1 // pred_check_branch
      %191 = sbr.rel (0) target = $region25
    $region24: #{net_forward.11} parent=1 // pred_region
      %193 = vsyncadd [#allocation3], 0
      %s195 = sshll.u32 [#allocation2], 4
      %s196 = int_to_ptr.vmem [resolvable:$true] %s195
      %s197 = sshll.u32 %s5, 4
      %s198 = int_to_ptr.hbm [resolvable:$true] %s197
      %200 = dma.vmem_to_hbm [thread:$0]  %s196, 32, %s198, [#allocation3]
    $region25: #{net_forward.11} parent=1 // pred_fallthru
      _
    // Predicated region
    $region26: #{net_forward.11} parent=1 // pred_check
      _
    $region27: #{net_forward.11} parent=1 // pred_check_branch
      %202 = sbr.rel (0) target = $region29
    $region28: #{net_forward.11} parent=1 // pred_region
      %204 = dma.done [#allocation3], 32
    $region29: #{net_forward.11} parent=1 // pred_fallthru
      _
    %205 = vsyncpa [#allocation3], 1

</llo_original>
